<compile_context>
chip_gen: v6e
topology: v6e:2x2x1
jax: 0.10.0
libtpu: 0.0.40
codegen_flags: <defaults>
</compile_context>

<pallas_src>
import functools

import jax
import jax.numpy as jnp
from jax.experimental import pallas as pl
from jax.experimental.pallas import tpu as pltpu


# ----------------------------- Pallas kernel --------------------------------
def fused_lstm_kernel(*refs, num_layers, hidden_size, seq_len, batch):
    """Fused multi-layer LSTM over a full sequence + final tanh.

    refs = (x_ref,                                  # (T*B, Din) f32, time-major flattened
            wih_0, whh_0, b_0, ..., wih_{L-1}, whh_{L-1}, b_{L-1},
            out_ref)                                # (B, H) f32 = tanh(h_T of last layer)

    Weights are bf16, gate order i,f,g,o.  The g-gate column block of wih/whh and the
    g block of b are pre-scaled by 2 so that tanh(g_pre) == 2*sigmoid(gates_g) - 1,
    letting one full-vreg sigmoid cover all four gates.  b_l = b_ih + b_hh (f32, (1,4H)).
    """
    x_ref = refs[0]
    out_ref = refs[1 + 3 * num_layers]
    T, B, H = seq_len, batch, hidden_size

    x_flat = x_ref[...].astype(jnp.bfloat16)            # (T*B, Din) layer-0 input (MXU operand)
    h = None
    for l in range(num_layers):                         # static Python loop over layers
        wih = refs[1 + 3 * l][...]                      # (Din, 4H) bf16, g-cols pre-scaled x2
        whh = refs[2 + 3 * l][...]                      # (H,   4H) bf16, g-cols pre-scaled x2
        b = refs[3 + 3 * l][...]                        # (1,   4H) f32,  g-block pre-scaled x2

        # ---- hoisted input projection: one big MXU matmul per layer, bias folded in ----
        gx = jnp.dot(x_flat, wih, preferred_element_type=jnp.float32) + b   # (T*B, 4H) f32
        # gx is T*B x 4H f32 = 8 vregs at these sizes -> keep it in registers (no VMEM scratch).

        h = jnp.zeros((B, H), jnp.float32)
        c = jnp.zeros((B, H), jnp.float32)
        last_layer = (l == num_layers - 1)              # last layer: only h_T is consumed
        hs = []
        # Fully-unrolled recurrence (static T): only the small h @ Whh matmul is serial.
        for t in range(T):
            gates = gx[t * B:(t + 1) * B, :] + jnp.dot(
                h.astype(jnp.bfloat16), whh, preferred_element_type=jnp.float32)   # (B, 4H)
            # Single full-vreg transcendental pass (EUP): sigmoid only.
            sig = jax.nn.sigmoid(gates)
            i_g = sig[:, 0 * H:1 * H]
            f_g = sig[:, 1 * H:2 * H]
            g_g = 2.0 * sig[:, 2 * H:3 * H] - 1.0       # tanh(x) = 2*sigmoid(2x) - 1
            o_g = sig[:, 3 * H:4 * H]
            c = f_g * c + i_g * g_g
            h = o_g * jnp.tanh(c)
            if not last_layer:
                hs.append(h)
        if not last_layer:
            # Inter-layer sequence handed over in registers (sublane concat of 8-row tiles).
            x_flat = jnp.concatenate(hs, axis=0).astype(jnp.bfloat16)      # (T*B, H)

    # Dropout(p=0.2) in eval mode is identity; final activation fused here.
    out_ref[...] = jnp.tanh(h)


def lstm_forward_fused(x_flat, layer_params, seq_len, batch):
    """x_flat: (T*B, Din) f32 time-major; layer_params: [(wih bf16 (Din,4H), whh bf16 (H,4H), b f32 (1,4H))].

    Returns tanh(h_T of the last layer): (B, H) f32.  Single pallas_call for the whole stack.
    """
    num_layers = len(layer_params)
    H = layer_params[0][1].shape[0]

    flat = []
    for (wih, whh, b) in layer_params:
        flat += [wih, whh, b]

    kernel = functools.partial(fused_lstm_kernel, num_layers=num_layers,
                               hidden_size=H, seq_len=seq_len, batch=batch)
    return pl.pallas_call(
        kernel,
        out_shape=jax.ShapeDtypeStruct((batch, H), jnp.float32),
        in_specs=[pl.BlockSpec(memory_space=pltpu.MemorySpace.VMEM)] * (1 + 3 * num_layers),
        out_specs=pl.BlockSpec(memory_space=pltpu.MemorySpace.VMEM),
    )(x_flat, *flat)


# ------------------------------ Model wrapper --------------------------------
def init_params(key, vocab_size, input_dim, hidden_size, num_layers, padding_idx):
    """Deterministic parameter init mirroring the PyTorch module's shapes."""
    params = {}
    k_emb, key = jax.random.split(key)
    emb = jax.random.normal(k_emb, (vocab_size, input_dim), jnp.float32)
    emb = emb.at[padding_idx].set(0.0)                   # padding_idx row is zero
    params["embedding"] = emb

    bound = 1.0 / jnp.sqrt(hidden_size)
    for l in range(num_layers):
        d_in = input_dim if l == 0 else hidden_size
        k1, k2, k3, k4, key = jax.random.split(key, 5)
        # Stored pre-transposed for the kernel: (Din, 4H) and (H, 4H), gate order i,f,g,o.
        params[f"wih_{l}"] = jax.random.uniform(
            k1, (d_in, 4 * hidden_size), jnp.float32, -bound, bound)
        params[f"whh_{l}"] = jax.random.uniform(
            k2, (hidden_size, 4 * hidden_size), jnp.float32, -bound, bound)
        b_ih = jax.random.uniform(k3, (4 * hidden_size,), jnp.float32, -bound, bound)
        b_hh = jax.random.uniform(k4, (4 * hidden_size,), jnp.float32, -bound, bound)
        params[f"b_{l}"] = (b_ih + b_hh).reshape(1, 4 * hidden_size)

    # fc layer exists in __init__ but is never used in forward; initialized for parity.
    k5, k6, _ = jax.random.split(key, 3)
    fb = 1.0 / jnp.sqrt(hidden_size)
    params["fc_w"] = jax.random.uniform(k5, (hidden_size, input_dim), jnp.float32, -fb, fb)
    params["fc_b"] = jax.random.uniform(k6, (input_dim,), jnp.float32, -fb, fb)
    return params


def prepare_lstm_kernel_params(params, num_layers, hidden_size):
    """One-time weight prep: scale the g-gate block by 2 (tanh-via-sigmoid trick) and
    cast matmul operands to bf16 (f32 accumulation happens in-kernel)."""
    H = hidden_size
    prepped = []
    for l in range(num_layers):
        wih = params[f"wih_{l}"].at[:, 2 * H:3 * H].multiply(2.0)
        whh = params[f"whh_{l}"].at[:, 2 * H:3 * H].multiply(2.0)
        b = params[f"b_{l}"].at[:, 2 * H:3 * H].multiply(2.0)
        prepped.append((wih.astype(jnp.bfloat16), whh.astype(jnp.bfloat16), b))
    return prepped


@jax.jit
def lstm_model_forward(tokens, embedding, layer_params):
    """tokens: (B, T) int32 -> (B, H) float32.  Matches LSTM_model.forward (eval mode)."""
    B, T = tokens.shape
    emb = jnp.take(embedding, tokens, axis=0)            # (B, T, D)  embedding lookup (glue)
    x_seq = jnp.transpose(emb, (1, 0, 2))                # (T, B, D)  time-major for the kernel
    x_flat = x_seq.reshape(T * B, x_seq.shape[-1])       # flatten in XLA, not in-kernel
    # Dropout (eval) + tanh(out[:, -1, :]) are fused inside the kernel.
    return lstm_forward_fused(x_flat, layer_params, T, B)


# ---------------------------------- Main -------------------------------------
if __name__ == "__main__":
    VOCAB_SIZE = 50
    INPUT_DIM = 32
    HIDDEN_SIZE = 32
    NUM_LAYERS = 2
    PADDING_IDX = 0
    BATCH = 8
    SEQ = 8

    key = jax.random.PRNGKey(0)
    k_params, k_tokens = jax.random.split(key)
    params = init_params(k_params, VOCAB_SIZE, INPUT_DIM, HIDDEN_SIZE,
                         NUM_LAYERS, PADDING_IDX)
    layer_params = prepare_lstm_kernel_params(params, NUM_LAYERS, HIDDEN_SIZE)
    tokens = jax.random.randint(k_tokens, (BATCH, SEQ), 0, VOCAB_SIZE, jnp.int32)

    out = lstm_model_forward(tokens, params["embedding"], layer_params)
    jax.block_until_ready(out)
    assert out.shape == (BATCH, HIDDEN_SIZE)
    assert jnp.all(jnp.isfinite(out))
    assert jnp.all(jnp.abs(out) <= 1.0)   # final tanh bound
    print("KERNEL_OK")
</pallas_src>

<mosaic_0001>
module attributes {stable_mosaic.version = 11 : i64} {
  func.func @fused_lstm_kernel(%arg0: memref<64x32xf32, #tpu.memory_space<vmem>>, %arg1: memref<32x128xbf16, #tpu.memory_space<vmem>>, %arg2: memref<32x128xbf16, #tpu.memory_space<vmem>>, %arg3: memref<1x128xf32, #tpu.memory_space<vmem>>, %arg4: memref<32x128xbf16, #tpu.memory_space<vmem>>, %arg5: memref<32x128xbf16, #tpu.memory_space<vmem>>, %arg6: memref<1x128xf32, #tpu.memory_space<vmem>>, %arg7: memref<8x32xf32, #tpu.memory_space<vmem>>) attributes {dimension_semantics = [], scalar_prefetch = 0 : i64, scratch_operands = 0 : i64, tpu.core_type = #tpu.core_type<tc>} {
    %c0 = arith.constant 0 : index
    %c0_0 = arith.constant 0 : index
    %0 = vector.load %arg0[%c0, %c0_0] : memref<64x32xf32, #tpu.memory_space<vmem>>, vector<64x32xf32>
    %1 = arith.truncf %0 : vector<64x32xf32> to vector<64x32xbf16>
    %c0_1 = arith.constant 0 : index
    %c0_2 = arith.constant 0 : index
    %2 = vector.load %arg1[%c0_1, %c0_2] : memref<32x128xbf16, #tpu.memory_space<vmem>>, vector<32x128xbf16>
    %c0_3 = arith.constant 0 : index
    %c0_4 = arith.constant 0 : index
    %3 = vector.load %arg2[%c0_3, %c0_4] : memref<32x128xbf16, #tpu.memory_space<vmem>>, vector<32x128xbf16>
    %c0_5 = arith.constant 0 : index
    %c0_6 = arith.constant 0 : index
    %4 = vector.load %arg3[%c0_5, %c0_6] : memref<1x128xf32, #tpu.memory_space<vmem>>, vector<1x128xf32>
    %cst = arith.constant dense<0.000000e+00> : vector<64x128xf32>
    %5 = tpu.matmul %1, %2, %cst {dimension_numbers = #tpu.dot_dimension_numbers<[1], [0], [0], [1], [0, 0, 1, 1], [], []>} : vector<64x32xbf16>, vector<32x128xbf16>, vector<64x128xf32> -> vector<64x128xf32>
    %6 = vector.broadcast %4 : vector<1x128xf32> to vector<64x128xf32>
    %7 = arith.addf %5, %6 : vector<64x128xf32>
    %cst_7 = arith.constant 0.000000e+00 : f32
    %8 = vector.broadcast %cst_7 : f32 to vector<8x32xf32>
    %cst_8 = arith.constant 0.000000e+00 : f32
    %9 = vector.broadcast %cst_8 : f32 to vector<8x32xf32>
    %10 = vector.extract_strided_slice %7 {offsets = [0, 0], sizes = [8, 128], strides = [1, 1]} : vector<64x128xf32> to vector<8x128xf32>
    %11 = arith.truncf %8 : vector<8x32xf32> to vector<8x32xbf16>
    %cst_9 = arith.constant dense<0.000000e+00> : vector<8x128xf32>
    %12 = tpu.matmul %11, %3, %cst_9 {dimension_numbers = #tpu.dot_dimension_numbers<[1], [0], [0], [1], [0, 0, 1, 1], [], []>} : vector<8x32xbf16>, vector<32x128xbf16>, vector<8x128xf32> -> vector<8x128xf32>
    %13 = arith.addf %10, %12 : vector<8x128xf32>
    %14 = arith.negf %13 : vector<8x128xf32>
    %15 = math.exp %14 : vector<8x128xf32>
    %cst_10 = arith.constant 1.000000e+00 : f32
    %16 = vector.broadcast %cst_10 : f32 to vector<8x128xf32>
    %17 = arith.addf %16, %15 : vector<8x128xf32>
    %18 = arith.divf %16, %17 : vector<8x128xf32>
    %19 = vector.extract_strided_slice %18 {offsets = [0, 0], sizes = [8, 32], strides = [1, 1]} : vector<8x128xf32> to vector<8x32xf32>
    %20 = vector.extract_strided_slice %18 {offsets = [0, 32], sizes = [8, 32], strides = [1, 1]} : vector<8x128xf32> to vector<8x32xf32>
    %21 = vector.extract_strided_slice %18 {offsets = [0, 64], sizes = [8, 32], strides = [1, 1]} : vector<8x128xf32> to vector<8x32xf32>
    %cst_11 = arith.constant 2.000000e+00 : f32
    %22 = vector.broadcast %cst_11 : f32 to vector<8x32xf32>
    %23 = arith.mulf %22, %21 : vector<8x32xf32>
    %cst_12 = arith.constant 1.000000e+00 : f32
    %24 = vector.broadcast %cst_12 : f32 to vector<8x32xf32>
    %25 = arith.subf %23, %24 : vector<8x32xf32>
    %26 = vector.extract_strided_slice %18 {offsets = [0, 96], sizes = [8, 32], strides = [1, 1]} : vector<8x128xf32> to vector<8x32xf32>
    %27 = arith.mulf %20, %9 : vector<8x32xf32>
    %28 = arith.mulf %19, %25 : vector<8x32xf32>
    %29 = arith.addf %27, %28 : vector<8x32xf32>
    %30 = math.tanh %29 : vector<8x32xf32>
    %31 = arith.mulf %26, %30 : vector<8x32xf32>
    %32 = vector.extract_strided_slice %7 {offsets = [8, 0], sizes = [8, 128], strides = [1, 1]} : vector<64x128xf32> to vector<8x128xf32>
    %33 = arith.truncf %31 : vector<8x32xf32> to vector<8x32xbf16>
    %cst_13 = arith.constant dense<0.000000e+00> : vector<8x128xf32>
    %34 = tpu.matmul %33, %3, %cst_13 {dimension_numbers = #tpu.dot_dimension_numbers<[1], [0], [0], [1], [0, 0, 1, 1], [], []>} : vector<8x32xbf16>, vector<32x128xbf16>, vector<8x128xf32> -> vector<8x128xf32>
    %35 = arith.addf %32, %34 : vector<8x128xf32>
    %36 = arith.negf %35 : vector<8x128xf32>
    %37 = math.exp %36 : vector<8x128xf32>
    %cst_14 = arith.constant 1.000000e+00 : f32
    %38 = vector.broadcast %cst_14 : f32 to vector<8x128xf32>
    %39 = arith.addf %38, %37 : vector<8x128xf32>
    %40 = arith.divf %38, %39 : vector<8x128xf32>
    %41 = vector.extract_strided_slice %40 {offsets = [0, 0], sizes = [8, 32], strides = [1, 1]} : vector<8x128xf32> to vector<8x32xf32>
    %42 = vector.extract_strided_slice %40 {offsets = [0, 32], sizes = [8, 32], strides = [1, 1]} : vector<8x128xf32> to vector<8x32xf32>
    %43 = vector.extract_strided_slice %40 {offsets = [0, 64], sizes = [8, 32], strides = [1, 1]} : vector<8x128xf32> to vector<8x32xf32>
    %cst_15 = arith.constant 2.000000e+00 : f32
    %44 = vector.broadcast %cst_15 : f32 to vector<8x32xf32>
    %45 = arith.mulf %44, %43 : vector<8x32xf32>
    %cst_16 = arith.constant 1.000000e+00 : f32
    %46 = vector.broadcast %cst_16 : f32 to vector<8x32xf32>
    %47 = arith.subf %45, %46 : vector<8x32xf32>
    %48 = vector.extract_strided_slice %40 {offsets = [0, 96], sizes = [8, 32], strides = [1, 1]} : vector<8x128xf32> to vector<8x32xf32>
    %49 = arith.mulf %42, %29 : vector<8x32xf32>
    %50 = arith.mulf %41, %47 : vector<8x32xf32>
    %51 = arith.addf %49, %50 : vector<8x32xf32>
    %52 = math.tanh %51 : vector<8x32xf32>
    %53 = arith.mulf %48, %52 : vector<8x32xf32>
    %54 = vector.extract_strided_slice %7 {offsets = [16, 0], sizes = [8, 128], strides = [1, 1]} : vector<64x128xf32> to vector<8x128xf32>
    %55 = arith.truncf %53 : vector<8x32xf32> to vector<8x32xbf16>
    %cst_17 = arith.constant dense<0.000000e+00> : vector<8x128xf32>
    %56 = tpu.matmul %55, %3, %cst_17 {dimension_numbers = #tpu.dot_dimension_numbers<[1], [0], [0], [1], [0, 0, 1, 1], [], []>} : vector<8x32xbf16>, vector<32x128xbf16>, vector<8x128xf32> -> vector<8x128xf32>
    %57 = arith.addf %54, %56 : vector<8x128xf32>
    %58 = arith.negf %57 : vector<8x128xf32>
    %59 = math.exp %58 : vector<8x128xf32>
    %cst_18 = arith.constant 1.000000e+00 : f32
    %60 = vector.broadcast %cst_18 : f32 to vector<8x128xf32>
    %61 = arith.addf %60, %59 : vector<8x128xf32>
    %62 = arith.divf %60, %61 : vector<8x128xf32>
    %63 = vector.extract_strided_slice %62 {offsets = [0, 0], sizes = [8, 32], strides = [1, 1]} : vector<8x128xf32> to vector<8x32xf32>
    %64 = vector.extract_strided_slice %62 {offsets = [0, 32], sizes = [8, 32], strides = [1, 1]} : vector<8x128xf32> to vector<8x32xf32>
    %65 = vector.extract_strided_slice %62 {offsets = [0, 64], sizes = [8, 32], strides = [1, 1]} : vector<8x128xf32> to vector<8x32xf32>
    %cst_19 = arith.constant 2.000000e+00 : f32
    %66 = vector.broadcast %cst_19 : f32 to vector<8x32xf32>
    %67 = arith.mulf %66, %65 : vector<8x32xf32>
    %cst_20 = arith.constant 1.000000e+00 : f32
    %68 = vector.broadcast %cst_20 : f32 to vector<8x32xf32>
    %69 = arith.subf %67, %68 : vector<8x32xf32>
    %70 = vector.extract_strided_slice %62 {offsets = [0, 96], sizes = [8, 32], strides = [1, 1]} : vector<8x128xf32> to vector<8x32xf32>
    %71 = arith.mulf %64, %51 : vector<8x32xf32>
    %72 = arith.mulf %63, %69 : vector<8x32xf32>
    %73 = arith.addf %71, %72 : vector<8x32xf32>
    %74 = math.tanh %73 : vector<8x32xf32>
    %75 = arith.mulf %70, %74 : vector<8x32xf32>
    %76 = vector.extract_strided_slice %7 {offsets = [24, 0], sizes = [8, 128], strides = [1, 1]} : vector<64x128xf32> to vector<8x128xf32>
    %77 = arith.truncf %75 : vector<8x32xf32> to vector<8x32xbf16>
    %cst_21 = arith.constant dense<0.000000e+00> : vector<8x128xf32>
    %78 = tpu.matmul %77, %3, %cst_21 {dimension_numbers = #tpu.dot_dimension_numbers<[1], [0], [0], [1], [0, 0, 1, 1], [], []>} : vector<8x32xbf16>, vector<32x128xbf16>, vector<8x128xf32> -> vector<8x128xf32>
    %79 = arith.addf %76, %78 : vector<8x128xf32>
    %80 = arith.negf %79 : vector<8x128xf32>
    %81 = math.exp %80 : vector<8x128xf32>
    %cst_22 = arith.constant 1.000000e+00 : f32
    %82 = vector.broadcast %cst_22 : f32 to vector<8x128xf32>
    %83 = arith.addf %82, %81 : vector<8x128xf32>
    %84 = arith.divf %82, %83 : vector<8x128xf32>
    %85 = vector.extract_strided_slice %84 {offsets = [0, 0], sizes = [8, 32], strides = [1, 1]} : vector<8x128xf32> to vector<8x32xf32>
    %86 = vector.extract_strided_slice %84 {offsets = [0, 32], sizes = [8, 32], strides = [1, 1]} : vector<8x128xf32> to vector<8x32xf32>
    %87 = vector.extract_strided_slice %84 {offsets = [0, 64], sizes = [8, 32], strides = [1, 1]} : vector<8x128xf32> to vector<8x32xf32>
    %cst_23 = arith.constant 2.000000e+00 : f32
    %88 = vector.broadcast %cst_23 : f32 to vector<8x32xf32>
    %89 = arith.mulf %88, %87 : vector<8x32xf32>
    %cst_24 = arith.constant 1.000000e+00 : f32
    %90 = vector.broadcast %cst_24 : f32 to vector<8x32xf32>
    %91 = arith.subf %89, %90 : vector<8x32xf32>
    %92 = vector.extract_strided_slice %84 {offsets = [0, 96], sizes = [8, 32], strides = [1, 1]} : vector<8x128xf32> to vector<8x32xf32>
    %93 = arith.mulf %86, %73 : vector<8x32xf32>
    %94 = arith.mulf %85, %91 : vector<8x32xf32>
    %95 = arith.addf %93, %94 : vector<8x32xf32>
    %96 = math.tanh %95 : vector<8x32xf32>
    %97 = arith.mulf %92, %96 : vector<8x32xf32>
    %98 = vector.extract_strided_slice %7 {offsets = [32, 0], sizes = [8, 128], strides = [1, 1]} : vector<64x128xf32> to vector<8x128xf32>
    %99 = arith.truncf %97 : vector<8x32xf32> to vector<8x32xbf16>
    %cst_25 = arith.constant dense<0.000000e+00> : vector<8x128xf32>
    %100 = tpu.matmul %99, %3, %cst_25 {dimension_numbers = #tpu.dot_dimension_numbers<[1], [0], [0], [1], [0, 0, 1, 1], [], []>} : vector<8x32xbf16>, vector<32x128xbf16>, vector<8x128xf32> -> vector<8x128xf32>
    %101 = arith.addf %98, %100 : vector<8x128xf32>
    %102 = arith.negf %101 : vector<8x128xf32>
    %103 = math.exp %102 : vector<8x128xf32>
    %cst_26 = arith.constant 1.000000e+00 : f32
    %104 = vector.broadcast %cst_26 : f32 to vector<8x128xf32>
    %105 = arith.addf %104, %103 : vector<8x128xf32>
    %106 = arith.divf %104, %105 : vector<8x128xf32>
    %107 = vector.extract_strided_slice %106 {offsets = [0, 0], sizes = [8, 32], strides = [1, 1]} : vector<8x128xf32> to vector<8x32xf32>
    %108 = vector.extract_strided_slice %106 {offsets = [0, 32], sizes = [8, 32], strides = [1, 1]} : vector<8x128xf32> to vector<8x32xf32>
    %109 = vector.extract_strided_slice %106 {offsets = [0, 64], sizes = [8, 32], strides = [1, 1]} : vector<8x128xf32> to vector<8x32xf32>
    %cst_27 = arith.constant 2.000000e+00 : f32
    %110 = vector.broadcast %cst_27 : f32 to vector<8x32xf32>
    %111 = arith.mulf %110, %109 : vector<8x32xf32>
    %cst_28 = arith.constant 1.000000e+00 : f32
    %112 = vector.broadcast %cst_28 : f32 to vector<8x32xf32>
    %113 = arith.subf %111, %112 : vector<8x32xf32>
    %114 = vector.extract_strided_slice %106 {offsets = [0, 96], sizes = [8, 32], strides = [1, 1]} : vector<8x128xf32> to vector<8x32xf32>
    %115 = arith.mulf %108, %95 : vector<8x32xf32>
    %116 = arith.mulf %107, %113 : vector<8x32xf32>
    %117 = arith.addf %115, %116 : vector<8x32xf32>
    %118 = math.tanh %117 : vector<8x32xf32>
    %119 = arith.mulf %114, %118 : vector<8x32xf32>
    %120 = vector.extract_strided_slice %7 {offsets = [40, 0], sizes = [8, 128], strides = [1, 1]} : vector<64x128xf32> to vector<8x128xf32>
    %121 = arith.truncf %119 : vector<8x32xf32> to vector<8x32xbf16>
    %cst_29 = arith.constant dense<0.000000e+00> : vector<8x128xf32>
    %122 = tpu.matmul %121, %3, %cst_29 {dimension_numbers = #tpu.dot_dimension_numbers<[1], [0], [0], [1], [0, 0, 1, 1], [], []>} : vector<8x32xbf16>, vector<32x128xbf16>, vector<8x128xf32> -> vector<8x128xf32>
    %123 = arith.addf %120, %122 : vector<8x128xf32>
    %124 = arith.negf %123 : vector<8x128xf32>
    %125 = math.exp %124 : vector<8x128xf32>
    %cst_30 = arith.constant 1.000000e+00 : f32
    %126 = vector.broadcast %cst_30 : f32 to vector<8x128xf32>
    %127 = arith.addf %126, %125 : vector<8x128xf32>
    %128 = arith.divf %126, %127 : vector<8x128xf32>
    %129 = vector.extract_strided_slice %128 {offsets = [0, 0], sizes = [8, 32], strides = [1, 1]} : vector<8x128xf32> to vector<8x32xf32>
    %130 = vector.extract_strided_slice %128 {offsets = [0, 32], sizes = [8, 32], strides = [1, 1]} : vector<8x128xf32> to vector<8x32xf32>
    %131 = vector.extract_strided_slice %128 {offsets = [0, 64], sizes = [8, 32], strides = [1, 1]} : vector<8x128xf32> to vector<8x32xf32>
    %cst_31 = arith.constant 2.000000e+00 : f32
    %132 = vector.broadcast %cst_31 : f32 to vector<8x32xf32>
    %133 = arith.mulf %132, %131 : vector<8x32xf32>
    %cst_32 = arith.constant 1.000000e+00 : f32
    %134 = vector.broadcast %cst_32 : f32 to vector<8x32xf32>
    %135 = arith.subf %133, %134 : vector<8x32xf32>
    %136 = vector.extract_strided_slice %128 {offsets = [0, 96], sizes = [8, 32], strides = [1, 1]} : vector<8x128xf32> to vector<8x32xf32>
    %137 = arith.mulf %130, %117 : vector<8x32xf32>
    %138 = arith.mulf %129, %135 : vector<8x32xf32>
    %139 = arith.addf %137, %138 : vector<8x32xf32>
    %140 = math.tanh %139 : vector<8x32xf32>
    %141 = arith.mulf %136, %140 : vector<8x32xf32>
    %142 = vector.extract_strided_slice %7 {offsets = [48, 0], sizes = [8, 128], strides = [1, 1]} : vector<64x128xf32> to vector<8x128xf32>
    %143 = arith.truncf %141 : vector<8x32xf32> to vector<8x32xbf16>
    %cst_33 = arith.constant dense<0.000000e+00> : vector<8x128xf32>
    %144 = tpu.matmul %143, %3, %cst_33 {dimension_numbers = #tpu.dot_dimension_numbers<[1], [0], [0], [1], [0, 0, 1, 1], [], []>} : vector<8x32xbf16>, vector<32x128xbf16>, vector<8x128xf32> -> vector<8x128xf32>
    %145 = arith.addf %142, %144 : vector<8x128xf32>
    %146 = arith.negf %145 : vector<8x128xf32>
    %147 = math.exp %146 : vector<8x128xf32>
    %cst_34 = arith.constant 1.000000e+00 : f32
    %148 = vector.broadcast %cst_34 : f32 to vector<8x128xf32>
    %149 = arith.addf %148, %147 : vector<8x128xf32>
    %150 = arith.divf %148, %149 : vector<8x128xf32>
    %151 = vector.extract_strided_slice %150 {offsets = [0, 0], sizes = [8, 32], strides = [1, 1]} : vector<8x128xf32> to vector<8x32xf32>
    %152 = vector.extract_strided_slice %150 {offsets = [0, 32], sizes = [8, 32], strides = [1, 1]} : vector<8x128xf32> to vector<8x32xf32>
    %153 = vector.extract_strided_slice %150 {offsets = [0, 64], sizes = [8, 32], strides = [1, 1]} : vector<8x128xf32> to vector<8x32xf32>
    %cst_35 = arith.constant 2.000000e+00 : f32
    %154 = vector.broadcast %cst_35 : f32 to vector<8x32xf32>
    %155 = arith.mulf %154, %153 : vector<8x32xf32>
    %cst_36 = arith.constant 1.000000e+00 : f32
    %156 = vector.broadcast %cst_36 : f32 to vector<8x32xf32>
    %157 = arith.subf %155, %156 : vector<8x32xf32>
    %158 = vector.extract_strided_slice %150 {offsets = [0, 96], sizes = [8, 32], strides = [1, 1]} : vector<8x128xf32> to vector<8x32xf32>
    %159 = arith.mulf %152, %139 : vector<8x32xf32>
    %160 = arith.mulf %151, %157 : vector<8x32xf32>
    %161 = arith.addf %159, %160 : vector<8x32xf32>
    %162 = math.tanh %161 : vector<8x32xf32>
    %163 = arith.mulf %158, %162 : vector<8x32xf32>
    %164 = vector.extract_strided_slice %7 {offsets = [56, 0], sizes = [8, 128], strides = [1, 1]} : vector<64x128xf32> to vector<8x128xf32>
    %165 = arith.truncf %163 : vector<8x32xf32> to vector<8x32xbf16>
    %cst_37 = arith.constant dense<0.000000e+00> : vector<8x128xf32>
    %166 = tpu.matmul %165, %3, %cst_37 {dimension_numbers = #tpu.dot_dimension_numbers<[1], [0], [0], [1], [0, 0, 1, 1], [], []>} : vector<8x32xbf16>, vector<32x128xbf16>, vector<8x128xf32> -> vector<8x128xf32>
    %167 = arith.addf %164, %166 : vector<8x128xf32>
    %168 = arith.negf %167 : vector<8x128xf32>
    %169 = math.exp %168 : vector<8x128xf32>
    %cst_38 = arith.constant 1.000000e+00 : f32
    %170 = vector.broadcast %cst_38 : f32 to vector<8x128xf32>
    %171 = arith.addf %170, %169 : vector<8x128xf32>
    %172 = arith.divf %170, %171 : vector<8x128xf32>
    %173 = vector.extract_strided_slice %172 {offsets = [0, 0], sizes = [8, 32], strides = [1, 1]} : vector<8x128xf32> to vector<8x32xf32>
    %174 = vector.extract_strided_slice %172 {offsets = [0, 32], sizes = [8, 32], strides = [1, 1]} : vector<8x128xf32> to vector<8x32xf32>
    %175 = vector.extract_strided_slice %172 {offsets = [0, 64], sizes = [8, 32], strides = [1, 1]} : vector<8x128xf32> to vector<8x32xf32>
    %cst_39 = arith.constant 2.000000e+00 : f32
    %176 = vector.broadcast %cst_39 : f32 to vector<8x32xf32>
    %177 = arith.mulf %176, %175 : vector<8x32xf32>
    %cst_40 = arith.constant 1.000000e+00 : f32
    %178 = vector.broadcast %cst_40 : f32 to vector<8x32xf32>
    %179 = arith.subf %177, %178 : vector<8x32xf32>
    %180 = vector.extract_strided_slice %172 {offsets = [0, 96], sizes = [8, 32], strides = [1, 1]} : vector<8x128xf32> to vector<8x32xf32>
    %181 = arith.mulf %174, %161 : vector<8x32xf32>
    %182 = arith.mulf %173, %179 : vector<8x32xf32>
    %183 = arith.addf %181, %182 : vector<8x32xf32>
    %184 = math.tanh %183 : vector<8x32xf32>
    %185 = arith.mulf %180, %184 : vector<8x32xf32>
    %186 = tpu.concatenate %31, %53, %75, %97, %119, %141, %163, %185 in 0 : vector<8x32xf32>, vector<8x32xf32>, vector<8x32xf32>, vector<8x32xf32>, vector<8x32xf32>, vector<8x32xf32>, vector<8x32xf32>, vector<8x32xf32> -> vector<64x32xf32>
    %187 = arith.truncf %186 : vector<64x32xf32> to vector<64x32xbf16>
    %c0_41 = arith.constant 0 : index
    %c0_42 = arith.constant 0 : index
    %188 = vector.load %arg4[%c0_41, %c0_42] : memref<32x128xbf16, #tpu.memory_space<vmem>>, vector<32x128xbf16>
    %c0_43 = arith.constant 0 : index
    %c0_44 = arith.constant 0 : index
    %189 = vector.load %arg5[%c0_43, %c0_44] : memref<32x128xbf16, #tpu.memory_space<vmem>>, vector<32x128xbf16>
    %c0_45 = arith.constant 0 : index
    %c0_46 = arith.constant 0 : index
    %190 = vector.load %arg6[%c0_45, %c0_46] : memref<1x128xf32, #tpu.memory_space<vmem>>, vector<1x128xf32>
    %cst_47 = arith.constant dense<0.000000e+00> : vector<64x128xf32>
    %191 = tpu.matmul %187, %188, %cst_47 {dimension_numbers = #tpu.dot_dimension_numbers<[1], [0], [0], [1], [0, 0, 1, 1], [], []>} : vector<64x32xbf16>, vector<32x128xbf16>, vector<64x128xf32> -> vector<64x128xf32>
    %192 = vector.broadcast %190 : vector<1x128xf32> to vector<64x128xf32>
    %193 = arith.addf %191, %192 : vector<64x128xf32>
    %cst_48 = arith.constant 0.000000e+00 : f32
    %194 = vector.broadcast %cst_48 : f32 to vector<8x32xf32>
    %cst_49 = arith.constant 0.000000e+00 : f32
    %195 = vector.broadcast %cst_49 : f32 to vector<8x32xf32>
    %196 = vector.extract_strided_slice %193 {offsets = [0, 0], sizes = [8, 128], strides = [1, 1]} : vector<64x128xf32> to vector<8x128xf32>
    %197 = arith.truncf %194 : vector<8x32xf32> to vector<8x32xbf16>
    %cst_50 = arith.constant dense<0.000000e+00> : vector<8x128xf32>
    %198 = tpu.matmul %197, %189, %cst_50 {dimension_numbers = #tpu.dot_dimension_numbers<[1], [0], [0], [1], [0, 0, 1, 1], [], []>} : vector<8x32xbf16>, vector<32x128xbf16>, vector<8x128xf32> -> vector<8x128xf32>
    %199 = arith.addf %196, %198 : vector<8x128xf32>
    %200 = arith.negf %199 : vector<8x128xf32>
    %201 = math.exp %200 : vector<8x128xf32>
    %cst_51 = arith.constant 1.000000e+00 : f32
    %202 = vector.broadcast %cst_51 : f32 to vector<8x128xf32>
    %203 = arith.addf %202, %201 : vector<8x128xf32>
    %204 = arith.divf %202, %203 : vector<8x128xf32>
    %205 = vector.extract_strided_slice %204 {offsets = [0, 0], sizes = [8, 32], strides = [1, 1]} : vector<8x128xf32> to vector<8x32xf32>
    %206 = vector.extract_strided_slice %204 {offsets = [0, 32], sizes = [8, 32], strides = [1, 1]} : vector<8x128xf32> to vector<8x32xf32>
    %207 = vector.extract_strided_slice %204 {offsets = [0, 64], sizes = [8, 32], strides = [1, 1]} : vector<8x128xf32> to vector<8x32xf32>
    %cst_52 = arith.constant 2.000000e+00 : f32
    %208 = vector.broadcast %cst_52 : f32 to vector<8x32xf32>
    %209 = arith.mulf %208, %207 : vector<8x32xf32>
    %cst_53 = arith.constant 1.000000e+00 : f32
    %210 = vector.broadcast %cst_53 : f32 to vector<8x32xf32>
    %211 = arith.subf %209, %210 : vector<8x32xf32>
    %212 = vector.extract_strided_slice %204 {offsets = [0, 96], sizes = [8, 32], strides = [1, 1]} : vector<8x128xf32> to vector<8x32xf32>
    %213 = arith.mulf %206, %195 : vector<8x32xf32>
    %214 = arith.mulf %205, %211 : vector<8x32xf32>
    %215 = arith.addf %213, %214 : vector<8x32xf32>
    %216 = math.tanh %215 : vector<8x32xf32>
    %217 = arith.mulf %212, %216 : vector<8x32xf32>
    %218 = vector.extract_strided_slice %193 {offsets = [8, 0], sizes = [8, 128], strides = [1, 1]} : vector<64x128xf32> to vector<8x128xf32>
    %219 = arith.truncf %217 : vector<8x32xf32> to vector<8x32xbf16>
    %cst_54 = arith.constant dense<0.000000e+00> : vector<8x128xf32>
    %220 = tpu.matmul %219, %189, %cst_54 {dimension_numbers = #tpu.dot_dimension_numbers<[1], [0], [0], [1], [0, 0, 1, 1], [], []>} : vector<8x32xbf16>, vector<32x128xbf16>, vector<8x128xf32> -> vector<8x128xf32>
    %221 = arith.addf %218, %220 : vector<8x128xf32>
    %222 = arith.negf %221 : vector<8x128xf32>
    %223 = math.exp %222 : vector<8x128xf32>
    %cst_55 = arith.constant 1.000000e+00 : f32
    %224 = vector.broadcast %cst_55 : f32 to vector<8x128xf32>
    %225 = arith.addf %224, %223 : vector<8x128xf32>
    %226 = arith.divf %224, %225 : vector<8x128xf32>
    %227 = vector.extract_strided_slice %226 {offsets = [0, 0], sizes = [8, 32], strides = [1, 1]} : vector<8x128xf32> to vector<8x32xf32>
    %228 = vector.extract_strided_slice %226 {offsets = [0, 32], sizes = [8, 32], strides = [1, 1]} : vector<8x128xf32> to vector<8x32xf32>
    %229 = vector.extract_strided_slice %226 {offsets = [0, 64], sizes = [8, 32], strides = [1, 1]} : vector<8x128xf32> to vector<8x32xf32>
    %cst_56 = arith.constant 2.000000e+00 : f32
    %230 = vector.broadcast %cst_56 : f32 to vector<8x32xf32>
    %231 = arith.mulf %230, %229 : vector<8x32xf32>
    %cst_57 = arith.constant 1.000000e+00 : f32
    %232 = vector.broadcast %cst_57 : f32 to vector<8x32xf32>
    %233 = arith.subf %231, %232 : vector<8x32xf32>
    %234 = vector.extract_strided_slice %226 {offsets = [0, 96], sizes = [8, 32], strides = [1, 1]} : vector<8x128xf32> to vector<8x32xf32>
    %235 = arith.mulf %228, %215 : vector<8x32xf32>
    %236 = arith.mulf %227, %233 : vector<8x32xf32>
    %237 = arith.addf %235, %236 : vector<8x32xf32>
    %238 = math.tanh %237 : vector<8x32xf32>
    %239 = arith.mulf %234, %238 : vector<8x32xf32>
    %240 = vector.extract_strided_slice %193 {offsets = [16, 0], sizes = [8, 128], strides = [1, 1]} : vector<64x128xf32> to vector<8x128xf32>
    %241 = arith.truncf %239 : vector<8x32xf32> to vector<8x32xbf16>
    %cst_58 = arith.constant dense<0.000000e+00> : vector<8x128xf32>
    %242 = tpu.matmul %241, %189, %cst_58 {dimension_numbers = #tpu.dot_dimension_numbers<[1], [0], [0], [1], [0, 0, 1, 1], [], []>} : vector<8x32xbf16>, vector<32x128xbf16>, vector<8x128xf32> -> vector<8x128xf32>
    %243 = arith.addf %240, %242 : vector<8x128xf32>
    %244 = arith.negf %243 : vector<8x128xf32>
    %245 = math.exp %244 : vector<8x128xf32>
    %cst_59 = arith.constant 1.000000e+00 : f32
    %246 = vector.broadcast %cst_59 : f32 to vector<8x128xf32>
    %247 = arith.addf %246, %245 : vector<8x128xf32>
    %248 = arith.divf %246, %247 : vector<8x128xf32>
    %249 = vector.extract_strided_slice %248 {offsets = [0, 0], sizes = [8, 32], strides = [1, 1]} : vector<8x128xf32> to vector<8x32xf32>
    %250 = vector.extract_strided_slice %248 {offsets = [0, 32], sizes = [8, 32], strides = [1, 1]} : vector<8x128xf32> to vector<8x32xf32>
    %251 = vector.extract_strided_slice %248 {offsets = [0, 64], sizes = [8, 32], strides = [1, 1]} : vector<8x128xf32> to vector<8x32xf32>
    %cst_60 = arith.constant 2.000000e+00 : f32
    %252 = vector.broadcast %cst_60 : f32 to vector<8x32xf32>
    %253 = arith.mulf %252, %251 : vector<8x32xf32>
    %cst_61 = arith.constant 1.000000e+00 : f32
    %254 = vector.broadcast %cst_61 : f32 to vector<8x32xf32>
    %255 = arith.subf %253, %254 : vector<8x32xf32>
    %256 = vector.extract_strided_slice %248 {offsets = [0, 96], sizes = [8, 32], strides = [1, 1]} : vector<8x128xf32> to vector<8x32xf32>
    %257 = arith.mulf %250, %237 : vector<8x32xf32>
    %258 = arith.mulf %249, %255 : vector<8x32xf32>
    %259 = arith.addf %257, %258 : vector<8x32xf32>
    %260 = math.tanh %259 : vector<8x32xf32>
    %261 = arith.mulf %256, %260 : vector<8x32xf32>
    %262 = vector.extract_strided_slice %193 {offsets = [24, 0], sizes = [8, 128], strides = [1, 1]} : vector<64x128xf32> to vector<8x128xf32>
    %263 = arith.truncf %261 : vector<8x32xf32> to vector<8x32xbf16>
    %cst_62 = arith.constant dense<0.000000e+00> : vector<8x128xf32>
    %264 = tpu.matmul %263, %189, %cst_62 {dimension_numbers = #tpu.dot_dimension_numbers<[1], [0], [0], [1], [0, 0, 1, 1], [], []>} : vector<8x32xbf16>, vector<32x128xbf16>, vector<8x128xf32> -> vector<8x128xf32>
    %265 = arith.addf %262, %264 : vector<8x128xf32>
    %266 = arith.negf %265 : vector<8x128xf32>
    %267 = math.exp %266 : vector<8x128xf32>
    %cst_63 = arith.constant 1.000000e+00 : f32
    %268 = vector.broadcast %cst_63 : f32 to vector<8x128xf32>
    %269 = arith.addf %268, %267 : vector<8x128xf32>
    %270 = arith.divf %268, %269 : vector<8x128xf32>
    %271 = vector.extract_strided_slice %270 {offsets = [0, 0], sizes = [8, 32], strides = [1, 1]} : vector<8x128xf32> to vector<8x32xf32>
    %272 = vector.extract_strided_slice %270 {offsets = [0, 32], sizes = [8, 32], strides = [1, 1]} : vector<8x128xf32> to vector<8x32xf32>
    %273 = vector.extract_strided_slice %270 {offsets = [0, 64], sizes = [8, 32], strides = [1, 1]} : vector<8x128xf32> to vector<8x32xf32>
    %cst_64 = arith.constant 2.000000e+00 : f32
    %274 = vector.broadcast %cst_64 : f32 to vector<8x32xf32>
    %275 = arith.mulf %274, %273 : vector<8x32xf32>
    %cst_65 = arith.constant 1.000000e+00 : f32
    %276 = vector.broadcast %cst_65 : f32 to vector<8x32xf32>
    %277 = arith.subf %275, %276 : vector<8x32xf32>
    %278 = vector.extract_strided_slice %270 {offsets = [0, 96], sizes = [8, 32], strides = [1, 1]} : vector<8x128xf32> to vector<8x32xf32>
    %279 = arith.mulf %272, %259 : vector<8x32xf32>
    %280 = arith.mulf %271, %277 : vector<8x32xf32>
    %281 = arith.addf %279, %280 : vector<8x32xf32>
    %282 = math.tanh %281 : vector<8x32xf32>
    %283 = arith.mulf %278, %282 : vector<8x32xf32>
    %284 = vector.extract_strided_slice %193 {offsets = [32, 0], sizes = [8, 128], strides = [1, 1]} : vector<64x128xf32> to vector<8x128xf32>
    %285 = arith.truncf %283 : vector<8x32xf32> to vector<8x32xbf16>
    %cst_66 = arith.constant dense<0.000000e+00> : vector<8x128xf32>
    %286 = tpu.matmul %285, %189, %cst_66 {dimension_numbers = #tpu.dot_dimension_numbers<[1], [0], [0], [1], [0, 0, 1, 1], [], []>} : vector<8x32xbf16>, vector<32x128xbf16>, vector<8x128xf32> -> vector<8x128xf32>
    %287 = arith.addf %284, %286 : vector<8x128xf32>
    %288 = arith.negf %287 : vector<8x128xf32>
    %289 = math.exp %288 : vector<8x128xf32>
    %cst_67 = arith.constant 1.000000e+00 : f32
    %290 = vector.broadcast %cst_67 : f32 to vector<8x128xf32>
    %291 = arith.addf %290, %289 : vector<8x128xf32>
    %292 = arith.divf %290, %291 : vector<8x128xf32>
    %293 = vector.extract_strided_slice %292 {offsets = [0, 0], sizes = [8, 32], strides = [1, 1]} : vector<8x128xf32> to vector<8x32xf32>
    %294 = vector.extract_strided_slice %292 {offsets = [0, 32], sizes = [8, 32], strides = [1, 1]} : vector<8x128xf32> to vector<8x32xf32>
    %295 = vector.extract_strided_slice %292 {offsets = [0, 64], sizes = [8, 32], strides = [1, 1]} : vector<8x128xf32> to vector<8x32xf32>
    %cst_68 = arith.constant 2.000000e+00 : f32
    %296 = vector.broadcast %cst_68 : f32 to vector<8x32xf32>
    %297 = arith.mulf %296, %295 : vector<8x32xf32>
    %cst_69 = arith.constant 1.000000e+00 : f32
    %298 = vector.broadcast %cst_69 : f32 to vector<8x32xf32>
    %299 = arith.subf %297, %298 : vector<8x32xf32>
    %300 = vector.extract_strided_slice %292 {offsets = [0, 96], sizes = [8, 32], strides = [1, 1]} : vector<8x128xf32> to vector<8x32xf32>
    %301 = arith.mulf %294, %281 : vector<8x32xf32>
    %302 = arith.mulf %293, %299 : vector<8x32xf32>
    %303 = arith.addf %301, %302 : vector<8x32xf32>
    %304 = math.tanh %303 : vector<8x32xf32>
    %305 = arith.mulf %300, %304 : vector<8x32xf32>
    %306 = vector.extract_strided_slice %193 {offsets = [40, 0], sizes = [8, 128], strides = [1, 1]} : vector<64x128xf32> to vector<8x128xf32>
    %307 = arith.truncf %305 : vector<8x32xf32> to vector<8x32xbf16>
    %cst_70 = arith.constant dense<0.000000e+00> : vector<8x128xf32>
    %308 = tpu.matmul %307, %189, %cst_70 {dimension_numbers = #tpu.dot_dimension_numbers<[1], [0], [0], [1], [0, 0, 1, 1], [], []>} : vector<8x32xbf16>, vector<32x128xbf16>, vector<8x128xf32> -> vector<8x128xf32>
    %309 = arith.addf %306, %308 : vector<8x128xf32>
    %310 = arith.negf %309 : vector<8x128xf32>
    %311 = math.exp %310 : vector<8x128xf32>
    %cst_71 = arith.constant 1.000000e+00 : f32
    %312 = vector.broadcast %cst_71 : f32 to vector<8x128xf32>
    %313 = arith.addf %312, %311 : vector<8x128xf32>
    %314 = arith.divf %312, %313 : vector<8x128xf32>
    %315 = vector.extract_strided_slice %314 {offsets = [0, 0], sizes = [8, 32], strides = [1, 1]} : vector<8x128xf32> to vector<8x32xf32>
    %316 = vector.extract_strided_slice %314 {offsets = [0, 32], sizes = [8, 32], strides = [1, 1]} : vector<8x128xf32> to vector<8x32xf32>
    %317 = vector.extract_strided_slice %314 {offsets = [0, 64], sizes = [8, 32], strides = [1, 1]} : vector<8x128xf32> to vector<8x32xf32>
    %cst_72 = arith.constant 2.000000e+00 : f32
    %318 = vector.broadcast %cst_72 : f32 to vector<8x32xf32>
    %319 = arith.mulf %318, %317 : vector<8x32xf32>
    %cst_73 = arith.constant 1.000000e+00 : f32
    %320 = vector.broadcast %cst_73 : f32 to vector<8x32xf32>
    %321 = arith.subf %319, %320 : vector<8x32xf32>
    %322 = vector.extract_strided_slice %314 {offsets = [0, 96], sizes = [8, 32], strides = [1, 1]} : vector<8x128xf32> to vector<8x32xf32>
    %323 = arith.mulf %316, %303 : vector<8x32xf32>
    %324 = arith.mulf %315, %321 : vector<8x32xf32>
    %325 = arith.addf %323, %324 : vector<8x32xf32>
    %326 = math.tanh %325 : vector<8x32xf32>
    %327 = arith.mulf %322, %326 : vector<8x32xf32>
    %328 = vector.extract_strided_slice %193 {offsets = [48, 0], sizes = [8, 128], strides = [1, 1]} : vector<64x128xf32> to vector<8x128xf32>
    %329 = arith.truncf %327 : vector<8x32xf32> to vector<8x32xbf16>
    %cst_74 = arith.constant dense<0.000000e+00> : vector<8x128xf32>
    %330 = tpu.matmul %329, %189, %cst_74 {dimension_numbers = #tpu.dot_dimension_numbers<[1], [0], [0], [1], [0, 0, 1, 1], [], []>} : vector<8x32xbf16>, vector<32x128xbf16>, vector<8x128xf32> -> vector<8x128xf32>
    %331 = arith.addf %328, %330 : vector<8x128xf32>
    %332 = arith.negf %331 : vector<8x128xf32>
    %333 = math.exp %332 : vector<8x128xf32>
    %cst_75 = arith.constant 1.000000e+00 : f32
    %334 = vector.broadcast %cst_75 : f32 to vector<8x128xf32>
    %335 = arith.addf %334, %333 : vector<8x128xf32>
    %336 = arith.divf %334, %335 : vector<8x128xf32>
    %337 = vector.extract_strided_slice %336 {offsets = [0, 0], sizes = [8, 32], strides = [1, 1]} : vector<8x128xf32> to vector<8x32xf32>
    %338 = vector.extract_strided_slice %336 {offsets = [0, 32], sizes = [8, 32], strides = [1, 1]} : vector<8x128xf32> to vector<8x32xf32>
    %339 = vector.extract_strided_slice %336 {offsets = [0, 64], sizes = [8, 32], strides = [1, 1]} : vector<8x128xf32> to vector<8x32xf32>
    %cst_76 = arith.constant 2.000000e+00 : f32
    %340 = vector.broadcast %cst_76 : f32 to vector<8x32xf32>
    %341 = arith.mulf %340, %339 : vector<8x32xf32>
    %cst_77 = arith.constant 1.000000e+00 : f32
    %342 = vector.broadcast %cst_77 : f32 to vector<8x32xf32>
    %343 = arith.subf %341, %342 : vector<8x32xf32>
    %344 = vector.extract_strided_slice %336 {offsets = [0, 96], sizes = [8, 32], strides = [1, 1]} : vector<8x128xf32> to vector<8x32xf32>
    %345 = arith.mulf %338, %325 : vector<8x32xf32>
    %346 = arith.mulf %337, %343 : vector<8x32xf32>
    %347 = arith.addf %345, %346 : vector<8x32xf32>
    %348 = math.tanh %347 : vector<8x32xf32>
    %349 = arith.mulf %344, %348 : vector<8x32xf32>
    %350 = vector.extract_strided_slice %193 {offsets = [56, 0], sizes = [8, 128], strides = [1, 1]} : vector<64x128xf32> to vector<8x128xf32>
    %351 = arith.truncf %349 : vector<8x32xf32> to vector<8x32xbf16>
    %cst_78 = arith.constant dense<0.000000e+00> : vector<8x128xf32>
    %352 = tpu.matmul %351, %189, %cst_78 {dimension_numbers = #tpu.dot_dimension_numbers<[1], [0], [0], [1], [0, 0, 1, 1], [], []>} : vector<8x32xbf16>, vector<32x128xbf16>, vector<8x128xf32> -> vector<8x128xf32>
    %353 = arith.addf %350, %352 : vector<8x128xf32>
    %354 = arith.negf %353 : vector<8x128xf32>
    %355 = math.exp %354 : vector<8x128xf32>
    %cst_79 = arith.constant 1.000000e+00 : f32
    %356 = vector.broadcast %cst_79 : f32 to vector<8x128xf32>
    %357 = arith.addf %356, %355 : vector<8x128xf32>
    %358 = arith.divf %356, %357 : vector<8x128xf32>
    %359 = vector.extract_strided_slice %358 {offsets = [0, 0], sizes = [8, 32], strides = [1, 1]} : vector<8x128xf32> to vector<8x32xf32>
    %360 = vector.extract_strided_slice %358 {offsets = [0, 32], sizes = [8, 32], strides = [1, 1]} : vector<8x128xf32> to vector<8x32xf32>
    %361 = vector.extract_strided_slice %358 {offsets = [0, 64], sizes = [8, 32], strides = [1, 1]} : vector<8x128xf32> to vector<8x32xf32>
    %cst_80 = arith.constant 2.000000e+00 : f32
    %362 = vector.broadcast %cst_80 : f32 to vector<8x32xf32>
    %363 = arith.mulf %362, %361 : vector<8x32xf32>
    %cst_81 = arith.constant 1.000000e+00 : f32
    %364 = vector.broadcast %cst_81 : f32 to vector<8x32xf32>
    %365 = arith.subf %363, %364 : vector<8x32xf32>
    %366 = vector.extract_strided_slice %358 {offsets = [0, 96], sizes = [8, 32], strides = [1, 1]} : vector<8x128xf32> to vector<8x32xf32>
    %367 = arith.mulf %360, %347 : vector<8x32xf32>
    %368 = arith.mulf %359, %365 : vector<8x32xf32>
    %369 = arith.addf %367, %368 : vector<8x32xf32>
    %370 = math.tanh %369 : vector<8x32xf32>
    %371 = arith.mulf %366, %370 : vector<8x32xf32>
    %372 = math.tanh %371 : vector<8x32xf32>
    %c0_82 = arith.constant 0 : index
    %c0_83 = arith.constant 0 : index
    %373 = vector.load %arg7[%c0_82, %c0_83] : memref<8x32xf32, #tpu.memory_space<vmem>>, vector<8x32xf32>
    tpu.vector_store %arg7[%c0_82, %c0_83], %372 {strides = array<i32>} : memref<8x32xf32, #tpu.memory_space<vmem>>, vector<8x32xf32>,
    return
  }
}

</mosaic_0001>

<llo_original>
// kernel: lstm_model_forward.1
$region0: #{lstm_model_forward.1}
  #allocation0 [shape = 'u32[]', space=smem, size = 0x4, offset = 0x4, fixed_abs, tag = 'smem constant byte address 0x4 - core index']
  #allocation1 [shape = 'u32[144,128]{1,0:T(1,128)}', space=vmem, size = 0x12000, scoped, tag = 'internal scratch']
  %s0 = inlined_call_operand.vmem [shape: f32[64,32], index: 0, kind: input, shape index: {}]
  %s1 = inlined_call_operand.vmem [shape: bf16[32,128], index: 1, kind: input, shape index: {}]
  %s2 = inlined_call_operand.vmem [shape: bf16[32,128], index: 2, kind: input, shape index: {}]
  %s3 = inlined_call_operand.vmem [shape: f32[1,128], index: 3, kind: input, shape index: {}]
  %s4 = inlined_call_operand.vmem [shape: bf16[32,128], index: 4, kind: input, shape index: {}]
  %s5 = inlined_call_operand.vmem [shape: bf16[32,128], index: 5, kind: input, shape index: {}]
  %s6 = inlined_call_operand.vmem [shape: f32[1,128], index: 6, kind: input, shape index: {}]
  %s7 = inlined_call_operand.hbm [shape: f32[8,32], index: 7, kind: output, shape index: {}]
  %s8 = sld [smem:[#allocation0]]
  $region38: #{lstm_model_forward.1} parent=0
    _
  %s10 = ssub.s32 1, %s8
  %s11 = scalar_select 0, %s10, %s8
  $region1: #{lstm_model_forward.1} parent=0
    #allocation2 [shape = 'u8[4096]{0}', space=vmem, size = 0x1000, scoped, tag = 'output window, operand 0, single buffered']
    #allocation3 [shape = 's32[1]{0}', space=sflag, size = 0x4, scoped, tag = 'scoped memory for lstm_model_forward.1']
    %12 = vsyncpa [#allocation3], 0
    // Predicated region
    $region2: #{lstm_model_forward.1} parent=1 // pred_check
      _
    $region3: #{lstm_model_forward.1} parent=1 // pred_check_branch
      %14 = sbr.rel (0) target = $region5
    $region4: #{lstm_model_forward.1} parent=1 // pred_region
      _
    $region5: #{lstm_model_forward.1} parent=1 // pred_fallthru
      _
    // Predicated region
    $region6: #{lstm_model_forward.1} parent=1 // pred_check
      _
    $region7: #{lstm_model_forward.1} parent=1 // pred_check_branch
      %16 = sbr.rel (0) target = $region9
    $region8: #{lstm_model_forward.1} parent=1 // pred_region
      _
    $region9: #{lstm_model_forward.1} parent=1 // pred_fallthru
      _
    // Predicated region
    $region10: #{lstm_model_forward.1} parent=1 // pred_check
      _
    $region11: #{lstm_model_forward.1} parent=1 // pred_check_branch
      %18 = sbr.rel (0) target = $region13
    $region12: #{lstm_model_forward.1} parent=1 // pred_region
      _
    $region13: #{lstm_model_forward.1} parent=1 // pred_fallthru
      _
    // Predicated region
    $region14: #{lstm_model_forward.1} parent=1 // pred_check
      _
    $region15: #{lstm_model_forward.1} parent=1 // pred_check_branch
      %20 = sbr.rel (0) target = $region17
    $region16: #{lstm_model_forward.1} parent=1 // pred_region
      _
    $region17: #{lstm_model_forward.1} parent=1 // pred_fallthru
      _
    // Predicated region
    $region18: #{lstm_model_forward.1} parent=1 // pred_check
      _
    $region19: #{lstm_model_forward.1} parent=1 // pred_check_branch
      %22 = sbr.rel (0) target = $region21
    $region20: #{lstm_model_forward.1} parent=1 // pred_region
      _
    $region21: #{lstm_model_forward.1} parent=1 // pred_fallthru
      _
    // Predicated region
    $region22: #{lstm_model_forward.1} parent=1 // pred_check
      _
    $region23: #{lstm_model_forward.1} parent=1 // pred_check_branch
      %24 = sbr.rel (0) target = $region25
    $region24: #{lstm_model_forward.1} parent=1 // pred_region
      _
    $region25: #{lstm_model_forward.1} parent=1 // pred_fallthru
      _
    // Predicated region
    $region26: #{lstm_model_forward.1} parent=1 // pred_check
      _
    $region27: #{lstm_model_forward.1} parent=1 // pred_check_branch
      %26 = sbr.rel (0) target = $region29
    $region28: #{lstm_model_forward.1} parent=1 // pred_region
      _
    $region29: #{lstm_model_forward.1} parent=1 // pred_fallthru
      _
    %v28 = vld [vmem:[%s0] sm:$0xff]
    %v29 = vld [vmem:[%s0 + $0x8] sm:$0xff]
    %v30 = vld [vmem:[%s0 + $0x10] sm:$0xff]
    %v31 = vld [vmem:[%s0 + $0x18] sm:$0xff]
    %v32 = vld [vmem:[%s0 + $0x20] sm:$0xff]
    %v33 = vld [vmem:[%s0 + $0x28] sm:$0xff]
    %v34 = vld [vmem:[%s0 + $0x30] sm:$0xff]
    %v35 = vld [vmem:[%s0 + $0x38] sm:$0xff]
    %v36 = vpack.c.bf16 %v29, %v28
    %v37 = vpack.c.bf16 %v31, %v30
    %v38 = vpack.c.bf16 %v33, %v32
    %v39 = vpack.c.bf16 %v35, %v34
    %v40 = vld [vmem:[%s1] sm:$0xf]
    %v41 = vld [vmem:[%s1 + $0x4] sm:$0xf]
    %v42 = vld [vmem:[%s1 + $0x8] sm:$0xf]
    %v43 = vld [vmem:[%s1 + $0xc] sm:$0xf]
    %v44 = vld [vmem:[%s2] sm:$0xf]
    %v45 = vld [vmem:[%s2 + $0x4] sm:$0xf]
    %v46 = vld [vmem:[%s2 + $0x8] sm:$0xf]
    %v47 = vld [vmem:[%s2 + $0xc] sm:$0xf]
    %v48 = vld [vmem:[%s3] sm:$0x1]
    %v50 = vlaneseq
    %v51 = vshrl.u32 %v50, 7
    %v52 = vsub.s32 0, %v51
    %v53 = vrot.slane %v48, %v52
    %v59 = vunpack.c.l.b16 %v40
    %v60 = vunpack.c.l.b16 %v41
    %v61 = vunpack.c.l.b16 %v42
    %v62 = vunpack.c.l.b16 %v43
    %v63 = vpack.c.b16 %v60, %v59
    %v64 = vpack.c.b16 %v62, %v61
    %vm67 = vcmask 261120
    %v69 = vsel %vm67, %v36, 0
    %v72 = vsel %vm67, %v37, 0
    %v75 = vsel %vm67, %v38, 0
    %v78 = vsel %vm67, %v39, 0
    %80 = vmatprep.subr.bf16.mxu0 0
    %81 = vmatpush1.bf16.msra.mxu0 0
    %82 = vmatprep.subr.bf16.mxu0 0
    %83 = vmatpush1.bf16.msra.mxu0 0
    %84 = vmatprep.subr.bf16.mxu0 0
    %85 = vmatpush1.bf16.msra.mxu0 0
    %86 = vmatprep.subr.bf16.mxu0 0
    %87 = vmatpush1.bf16.msra.mxu0 0
    %88 = vmatprep.subr.bf16.mxu0 0
    %89 = vmatpush1.bf16.msra.mxu0 0
    %90 = vmatprep.subr.bf16.mxu0 0
    %91 = vmatpush1.bf16.msra.mxu0 0
    %92 = vmatprep.subr.bf16.mxu0 0
    %93 = vmatpush1.bf16.msra.mxu0 %v64
    %94 = vmatprep.subr.bf16.mxu0 0
    %95 = vmatpush1.bf16.msra.mxu0 %v63
    %96 = vmatprep.subr.bf16.mxu0 0
    %97 = vmatpush2.bf16.msra.mxu0 0
    %98 = vmatprep.subr.bf16.mxu0 0
    %99 = vmatpush2.bf16.msra.mxu0 0
    %100 = vmatprep.subr.bf16.mxu0 0
    %101 = vmatpush2.bf16.msra.mxu0 0
    %102 = vmatprep.subr.bf16.mxu0 0
    %103 = vmatpush2.bf16.msra.mxu0 0
    %104 = vmatprep.subr.bf16.mxu0 0
    %105 = vmatpush2.bf16.msra.mxu0 0
    %106 = vmatprep.subr.bf16.mxu0 0
    %107 = vmatpush2.bf16.msra.mxu0 0
    %108 = vmatprep.subr.bf16.mxu0 0
    %109 = vmatpush2.bf16.msra.mxu0 0
    %110 = vmatprep.subr.bf16.mxu0 0
    %111 = vmatpush2.bf16.msra.mxu0 0
    %112 = vmatprep.mubr.bf16.mxu0 0
    %113 = vmatmul.mubr.bf16.gmra.mxu0 %v69
    %v114 = vpop.f32.mrf.mxu0
    %v115 = vadd.f32 %v53, %v114
    %v116 = vpop.f32.mrf.mxu0
    %v117 = vpop.f32.mrf.mxu0
    %v118 = vadd.f32 %v53, %v117
    %v119 = vpop.f32.mrf.mxu0
    %120 = vmatprep.mubr.bf16.mxu0 0
    %121 = vmatmul.mubr.bf16.gmra.mxu0 %v72
    %v122 = vpop.f32.mrf.mxu0
    %v123 = vadd.f32 %v53, %v122
    %v124 = vpop.f32.mrf.mxu0
    %v125 = vpop.f32.mrf.mxu0
    %v126 = vadd.f32 %v53, %v125
    %v127 = vpop.f32.mrf.mxu0
    %128 = vmatprep.mubr.bf16.mxu0 0
    %129 = vmatmul.mubr.bf16.gmra.mxu0 %v75
    %v130 = vpop.f32.mrf.mxu0
    %v131 = vadd.f32 %v53, %v130
    %v132 = vpop.f32.mrf.mxu0
    %v133 = vpop.f32.mrf.mxu0
    %v134 = vadd.f32 %v53, %v133
    %v135 = vpop.f32.mrf.mxu0
    %136 = vmatprep.mubr.bf16.mxu0 0
    %137 = vmatmul.mubr.bf16.gmra.mxu0 %v78
    %v138 = vpop.f32.mrf.mxu0
    %v139 = vadd.f32 %v53, %v138
    %v140 = vpop.f32.mrf.mxu0
    %v141 = vpop.f32.mrf.mxu0
    %v142 = vadd.f32 %v53, %v141
    %v143 = vpop.f32.mrf.mxu0
    %144 = vdwg.mxu0
    %v149 = vunpack.c.l.b16 %v44
    %v150 = vunpack.c.l.b16 %v45
    %v151 = vunpack.c.l.b16 %v46
    %v152 = vunpack.c.l.b16 %v47
    %v153 = vpack.c.b16 %v150, %v149
    %v154 = vpack.c.b16 %v152, %v151
    %v158 = vsel %vm67, 0, 0
    %160 = vmatprep.subr.bf16.mxu0 0
    %161 = vmatpush1.bf16.msra.mxu0 0
    %162 = vmatprep.subr.bf16.mxu0 0
    %163 = vmatpush1.bf16.msra.mxu0 0
    %164 = vmatprep.subr.bf16.mxu0 0
    %165 = vmatpush1.bf16.msra.mxu0 0
    %166 = vmatprep.subr.bf16.mxu0 0
    %167 = vmatpush1.bf16.msra.mxu0 0
    %168 = vmatprep.subr.bf16.mxu0 0
    %169 = vmatpush1.bf16.msra.mxu0 0
    %170 = vmatprep.subr.bf16.mxu0 0
    %171 = vmatpush1.bf16.msra.mxu0 0
    %172 = vmatprep.subr.bf16.mxu0 0
    %173 = vmatpush1.bf16.msra.mxu0 %v154
    %174 = vmatprep.subr.bf16.mxu0 0
    %175 = vmatpush1.bf16.msra.mxu0 %v153
    %176 = vmatprep.subr.bf16.mxu0 0
    %177 = vmatpush2.bf16.msra.mxu0 0
    %178 = vmatprep.subr.bf16.mxu0 0
    %179 = vmatpush2.bf16.msra.mxu0 0
    %180 = vmatprep.subr.bf16.mxu0 0
    %181 = vmatpush2.bf16.msra.mxu0 0
    %182 = vmatprep.subr.bf16.mxu0 0
    %183 = vmatpush2.bf16.msra.mxu0 0
    %184 = vmatprep.subr.bf16.mxu0 0
    %185 = vmatpush2.bf16.msra.mxu0 0
    %186 = vmatprep.subr.bf16.mxu0 0
    %187 = vmatpush2.bf16.msra.mxu0 0
    %188 = vmatprep.subr.bf16.mxu0 0
    %189 = vmatpush2.bf16.msra.mxu0 0
    %190 = vmatprep.subr.bf16.mxu0 0
    %191 = vmatpush2.bf16.msra.mxu0 0
    %192 = vmatprep.mubr.bf16.mxu0 0
    %193 = vmatmul.mubr.bf16.gmra.mxu0 %v158
    %v194 = vpop.f32.mrf.mxu0
    %v195 = vadd.f32 0.0, %v194
    %v196 = vpop.f32.mrf.mxu0
    %v197 = vpop.f32.mrf.mxu0
    %v198 = vpop.f32.mrf.mxu0
    %199 = vdwg.mxu0
    %v200 = vadd.f32 %v115, %v195
    %v201 = vxor.u32 %v200, 2147483648
    %v202 = vmul.f32 %v201, 1.442695
    %v203 = vpow.pop %v202
    %v204 = vadd.f32 %v203, 1.0
    %v205 = vrcp.pop %v204
    %v206 = vmul.f32 1.0, %v205
    %v207 = vmul.f32 %v206, 2.0
    %v208 = vsub.f32 %v207, 1.0
    %v209 = vmul.f32 %v206, 0.0
    %211 = vrot.lane.b32.xlu0 %v208, 64
    %v212 = vpop.permute.xlu0 %211
    %v214 = vmul.f32 %v206, %v212
    %216 = vrot.lane.b32.xlu0 %v214, 32
    %v217 = vpop.permute.xlu0 %216
    %v219 = vadd.f32 %v209, %v217
    %v220 = vtanh.pop %v219
    %222 = vrot.lane.b32.xlu0 %v220, 64
    %v223 = vpop.permute.xlu0 %222
    %v225 = vmul.f32 %v206, %v223
    %v226 = vpack.c.bf16 %v225, %v225
    %228 = vrot.lane.b32.xlu0 %v226, 32
    %v229 = vpop.permute.xlu0 %228
    %v231 = vsel %vm67, %v229, 0
    %233 = vmatprep.subr.bf16.mxu0 0
    %234 = vmatpush1.bf16.msra.mxu0 0
    %235 = vmatprep.subr.bf16.mxu0 0
    %236 = vmatpush1.bf16.msra.mxu0 0
    %237 = vmatprep.subr.bf16.mxu0 0
    %238 = vmatpush1.bf16.msra.mxu0 0
    %239 = vmatprep.subr.bf16.mxu0 0
    %240 = vmatpush1.bf16.msra.mxu0 0
    %241 = vmatprep.subr.bf16.mxu0 0
    %242 = vmatpush1.bf16.msra.mxu0 0
    %243 = vmatprep.subr.bf16.mxu0 0
    %244 = vmatpush1.bf16.msra.mxu0 0
    %245 = vmatprep.subr.bf16.mxu0 0
    %246 = vmatpush1.bf16.msra.mxu0 %v154
    %247 = vmatprep.subr.bf16.mxu0 0
    %248 = vmatpush1.bf16.msra.mxu0 %v153
    %249 = vmatprep.subr.bf16.mxu0 0
    %250 = vmatpush2.bf16.msra.mxu0 0
    %251 = vmatprep.subr.bf16.mxu0 0
    %252 = vmatpush2.bf16.msra.mxu0 0
    %253 = vmatprep.subr.bf16.mxu0 0
    %254 = vmatpush2.bf16.msra.mxu0 0
    %255 = vmatprep.subr.bf16.mxu0 0
    %256 = vmatpush2.bf16.msra.mxu0 0
    %257 = vmatprep.subr.bf16.mxu0 0
    %258 = vmatpush2.bf16.msra.mxu0 0
    %259 = vmatprep.subr.bf16.mxu0 0
    %260 = vmatpush2.bf16.msra.mxu0 0
    %261 = vmatprep.subr.bf16.mxu0 0
    %262 = vmatpush2.bf16.msra.mxu0 0
    %263 = vmatprep.subr.bf16.mxu0 0
    %264 = vmatpush2.bf16.msra.mxu0 0
    %265 = vmatprep.mubr.bf16.mxu0 0
    %266 = vmatmul.mubr.bf16.gmra.mxu0 %v231
    %v267 = vpop.f32.mrf.mxu0
    %v268 = vadd.f32 0.0, %v267
    %v269 = vpop.f32.mrf.mxu0
    %v270 = vpop.f32.mrf.mxu0
    %v271 = vpop.f32.mrf.mxu0
    %272 = vdwg.mxu0
    %v273 = vadd.f32 %v118, %v268
    %v274 = vxor.u32 %v273, 2147483648
    %v275 = vmul.f32 %v274, 1.442695
    %v276 = vpow.pop %v275
    %v277 = vadd.f32 %v276, 1.0
    %v278 = vrcp.pop %v277
    %v279 = vmul.f32 1.0, %v278
    %v280 = vmul.f32 %v279, 2.0
    %v281 = vsub.f32 %v280, 1.0
    %v282 = vmul.f32 %v279, %v219
    %284 = vrot.lane.b32.xlu0 %v281, 64
    %v285 = vpop.permute.xlu0 %284
    %v287 = vmul.f32 %v279, %v285
    %289 = vrot.lane.b32.xlu0 %v287, 32
    %v290 = vpop.permute.xlu0 %289
    %v292 = vadd.f32 %v282, %v290
    %v293 = vtanh.pop %v292
    %295 = vrot.lane.b32.xlu0 %v293, 64
    %v296 = vpop.permute.xlu0 %295
    %v298 = vmul.f32 %v279, %v296
    %v299 = vpack.c.bf16 %v298, %v298
    %301 = vrot.lane.b32.xlu0 %v299, 32
    %v302 = vpop.permute.xlu0 %301
    %v304 = vsel %vm67, %v302, 0
    %306 = vmatprep.subr.bf16.mxu0 0
    %307 = vmatpush1.bf16.msra.mxu0 0
    %308 = vmatprep.subr.bf16.mxu0 0
    %309 = vmatpush1.bf16.msra.mxu0 0
    %310 = vmatprep.subr.bf16.mxu0 0
    %311 = vmatpush1.bf16.msra.mxu0 0
    %312 = vmatprep.subr.bf16.mxu0 0
    %313 = vmatpush1.bf16.msra.mxu0 0
    %314 = vmatprep.subr.bf16.mxu0 0
    %315 = vmatpush1.bf16.msra.mxu0 0
    %316 = vmatprep.subr.bf16.mxu0 0
    %317 = vmatpush1.bf16.msra.mxu0 0
    %318 = vmatprep.subr.bf16.mxu0 0
    %319 = vmatpush1.bf16.msra.mxu0 %v154
    %320 = vmatprep.subr.bf16.mxu0 0
    %321 = vmatpush1.bf16.msra.mxu0 %v153
    %322 = vmatprep.subr.bf16.mxu0 0
    %323 = vmatpush2.bf16.msra.mxu0 0
    %324 = vmatprep.subr.bf16.mxu0 0
    %325 = vmatpush2.bf16.msra.mxu0 0
    %326 = vmatprep.subr.bf16.mxu0 0
    %327 = vmatpush2.bf16.msra.mxu0 0
    %328 = vmatprep.subr.bf16.mxu0 0
    %329 = vmatpush2.bf16.msra.mxu0 0
    %330 = vmatprep.subr.bf16.mxu0 0
    %331 = vmatpush2.bf16.msra.mxu0 0
    %332 = vmatprep.subr.bf16.mxu0 0
    %333 = vmatpush2.bf16.msra.mxu0 0
    %334 = vmatprep.subr.bf16.mxu0 0
    %335 = vmatpush2.bf16.msra.mxu0 0
    %336 = vmatprep.subr.bf16.mxu0 0
    %337 = vmatpush2.bf16.msra.mxu0 0
    %338 = vmatprep.mubr.bf16.mxu0 0
    %339 = vmatmul.mubr.bf16.gmra.mxu0 %v304
    %v340 = vpop.f32.mrf.mxu0
    %v341 = vadd.f32 0.0, %v340
    %v342 = vpop.f32.mrf.mxu0
    %v343 = vpop.f32.mrf.mxu0
    %v344 = vpop.f32.mrf.mxu0
    %345 = vdwg.mxu0
    %v346 = vadd.f32 %v123, %v341
    %v347 = vxor.u32 %v346, 2147483648
    %v348 = vmul.f32 %v347, 1.442695
    %v349 = vpow.pop %v348
    %v350 = vadd.f32 %v349, 1.0
    %v351 = vrcp.pop %v350
    %v352 = vmul.f32 1.0, %v351
    %v353 = vmul.f32 %v352, 2.0
    %v354 = vsub.f32 %v353, 1.0
    %v355 = vmul.f32 %v352, %v292
    %357 = vrot.lane.b32.xlu0 %v354, 64
    %v358 = vpop.permute.xlu0 %357
    %v360 = vmul.f32 %v352, %v358
    %362 = vrot.lane.b32.xlu0 %v360, 32
    %v363 = vpop.permute.xlu0 %362
    %v365 = vadd.f32 %v355, %v363
    %v366 = vtanh.pop %v365
    %368 = vrot.lane.b32.xlu0 %v366, 64
    %v369 = vpop.permute.xlu0 %368
    %v371 = vmul.f32 %v352, %v369
    %v372 = vpack.c.bf16 %v371, %v371
    %374 = vrot.lane.b32.xlu0 %v372, 32
    %v375 = vpop.permute.xlu0 %374
    %v377 = vsel %vm67, %v375, 0
    %379 = vmatprep.subr.bf16.mxu0 0
    %380 = vmatpush1.bf16.msra.mxu0 0
    %381 = vmatprep.subr.bf16.mxu0 0
    %382 = vmatpush1.bf16.msra.mxu0 0
    %383 = vmatprep.subr.bf16.mxu0 0
    %384 = vmatpush1.bf16.msra.mxu0 0
    %385 = vmatprep.subr.bf16.mxu0 0
    %386 = vmatpush1.bf16.msra.mxu0 0
    %387 = vmatprep.subr.bf16.mxu0 0
    %388 = vmatpush1.bf16.msra.mxu0 0
    %389 = vmatprep.subr.bf16.mxu0 0
    %390 = vmatpush1.bf16.msra.mxu0 0
    %391 = vmatprep.subr.bf16.mxu0 0
    %392 = vmatpush1.bf16.msra.mxu0 %v154
    %393 = vmatprep.subr.bf16.mxu0 0
    %394 = vmatpush1.bf16.msra.mxu0 %v153
    %395 = vmatprep.subr.bf16.mxu0 0
    %396 = vmatpush2.bf16.msra.mxu0 0
    %397 = vmatprep.subr.bf16.mxu0 0
    %398 = vmatpush2.bf16.msra.mxu0 0
    %399 = vmatprep.subr.bf16.mxu0 0
    %400 = vmatpush2.bf16.msra.mxu0 0
    %401 = vmatprep.subr.bf16.mxu0 0
    %402 = vmatpush2.bf16.msra.mxu0 0
    %403 = vmatprep.subr.bf16.mxu0 0
    %404 = vmatpush2.bf16.msra.mxu0 0
    %405 = vmatprep.subr.bf16.mxu0 0
    %406 = vmatpush2.bf16.msra.mxu0 0
    %407 = vmatprep.subr.bf16.mxu0 0
    %408 = vmatpush2.bf16.msra.mxu0 0
    %409 = vmatprep.subr.bf16.mxu0 0
    %410 = vmatpush2.bf16.msra.mxu0 0
    %411 = vmatprep.mubr.bf16.mxu0 0
    %412 = vmatmul.mubr.bf16.gmra.mxu0 %v377
    %v413 = vpop.f32.mrf.mxu0
    %v414 = vadd.f32 0.0, %v413
    %v415 = vpop.f32.mrf.mxu0
    %v416 = vpop.f32.mrf.mxu0
    %v417 = vpop.f32.mrf.mxu0
    %418 = vdwg.mxu0
    %v419 = vadd.f32 %v126, %v414
    %v420 = vxor.u32 %v419, 2147483648
    %v421 = vmul.f32 %v420, 1.442695
    %v422 = vpow.pop %v421
    %v423 = vadd.f32 %v422, 1.0
    %v424 = vrcp.pop %v423
    %v425 = vmul.f32 1.0, %v424
    %v426 = vmul.f32 %v425, 2.0
    %v427 = vsub.f32 %v426, 1.0
    %v428 = vmul.f32 %v425, %v365
    %430 = vrot.lane.b32.xlu0 %v427, 64
    %v431 = vpop.permute.xlu0 %430
    %v433 = vmul.f32 %v425, %v431
    %435 = vrot.lane.b32.xlu0 %v433, 32
    %v436 = vpop.permute.xlu0 %435
    %v438 = vadd.f32 %v428, %v436
    %v439 = vtanh.pop %v438
    %441 = vrot.lane.b32.xlu0 %v439, 64
    %v442 = vpop.permute.xlu0 %441
    %v444 = vmul.f32 %v425, %v442
    %v445 = vpack.c.bf16 %v444, %v444
    %447 = vrot.lane.b32.xlu0 %v445, 32
    %v448 = vpop.permute.xlu0 %447
    %v450 = vsel %vm67, %v448, 0
    %452 = vmatprep.subr.bf16.mxu0 0
    %453 = vmatpush1.bf16.msra.mxu0 0
    %454 = vmatprep.subr.bf16.mxu0 0
    %455 = vmatpush1.bf16.msra.mxu0 0
    %456 = vmatprep.subr.bf16.mxu0 0
    %457 = vmatpush1.bf16.msra.mxu0 0
    %458 = vmatprep.subr.bf16.mxu0 0
    %459 = vmatpush1.bf16.msra.mxu0 0
    %460 = vmatprep.subr.bf16.mxu0 0
    %461 = vmatpush1.bf16.msra.mxu0 0
    %462 = vmatprep.subr.bf16.mxu0 0
    %463 = vmatpush1.bf16.msra.mxu0 0
    %464 = vmatprep.subr.bf16.mxu0 0
    %465 = vmatpush1.bf16.msra.mxu0 %v154
    %466 = vmatprep.subr.bf16.mxu0 0
    %467 = vmatpush1.bf16.msra.mxu0 %v153
    %468 = vmatprep.subr.bf16.mxu0 0
    %469 = vmatpush2.bf16.msra.mxu0 0
    %470 = vmatprep.subr.bf16.mxu0 0
    %471 = vmatpush2.bf16.msra.mxu0 0
    %472 = vmatprep.subr.bf16.mxu0 0
    %473 = vmatpush2.bf16.msra.mxu0 0
    %474 = vmatprep.subr.bf16.mxu0 0
    %475 = vmatpush2.bf16.msra.mxu0 0
    %476 = vmatprep.subr.bf16.mxu0 0
    %477 = vmatpush2.bf16.msra.mxu0 0
    %478 = vmatprep.subr.bf16.mxu0 0
    %479 = vmatpush2.bf16.msra.mxu0 0
    %480 = vmatprep.subr.bf16.mxu0 0
    %481 = vmatpush2.bf16.msra.mxu0 0
    %482 = vmatprep.subr.bf16.mxu0 0
    %483 = vmatpush2.bf16.msra.mxu0 0
    %484 = vmatprep.mubr.bf16.mxu0 0
    %485 = vmatmul.mubr.bf16.gmra.mxu0 %v450
    %v486 = vpop.f32.mrf.mxu0
    %v487 = vadd.f32 0.0, %v486
    %v488 = vpop.f32.mrf.mxu0
    %v489 = vpop.f32.mrf.mxu0
    %v490 = vpop.f32.mrf.mxu0
    %491 = vdwg.mxu0
    %v492 = vadd.f32 %v131, %v487
    %v493 = vxor.u32 %v492, 2147483648
    %v494 = vmul.f32 %v493, 1.442695
    %v495 = vpow.pop %v494
    %v496 = vadd.f32 %v495, 1.0
    %v497 = vrcp.pop %v496
    %v498 = vmul.f32 1.0, %v497
    %v499 = vmul.f32 %v498, 2.0
    %v500 = vsub.f32 %v499, 1.0
    %v501 = vmul.f32 %v498, %v438
    %503 = vrot.lane.b32.xlu0 %v500, 64
    %v504 = vpop.permute.xlu0 %503
    %v506 = vmul.f32 %v498, %v504
    %508 = vrot.lane.b32.xlu0 %v506, 32
    %v509 = vpop.permute.xlu0 %508
    %v511 = vadd.f32 %v501, %v509
    %v512 = vtanh.pop %v511
    %514 = vrot.lane.b32.xlu0 %v512, 64
    %v515 = vpop.permute.xlu0 %514
    %v517 = vmul.f32 %v498, %v515
    %v518 = vpack.c.bf16 %v517, %v517
    %520 = vrot.lane.b32.xlu0 %v518, 32
    %v521 = vpop.permute.xlu0 %520
    %v523 = vsel %vm67, %v521, 0
    %525 = vmatprep.subr.bf16.mxu0 0
    %526 = vmatpush1.bf16.msra.mxu0 0
    %527 = vmatprep.subr.bf16.mxu0 0
    %528 = vmatpush1.bf16.msra.mxu0 0
    %529 = vmatprep.subr.bf16.mxu0 0
    %530 = vmatpush1.bf16.msra.mxu0 0
    %531 = vmatprep.subr.bf16.mxu0 0
    %532 = vmatpush1.bf16.msra.mxu0 0
    %533 = vmatprep.subr.bf16.mxu0 0
    %534 = vmatpush1.bf16.msra.mxu0 0
    %535 = vmatprep.subr.bf16.mxu0 0
    %536 = vmatpush1.bf16.msra.mxu0 0
    %537 = vmatprep.subr.bf16.mxu0 0
    %538 = vmatpush1.bf16.msra.mxu0 %v154
    %539 = vmatprep.subr.bf16.mxu0 0
    %540 = vmatpush1.bf16.msra.mxu0 %v153
    %541 = vmatprep.subr.bf16.mxu0 0
    %542 = vmatpush2.bf16.msra.mxu0 0
    %543 = vmatprep.subr.bf16.mxu0 0
    %544 = vmatpush2.bf16.msra.mxu0 0
    %545 = vmatprep.subr.bf16.mxu0 0
    %546 = vmatpush2.bf16.msra.mxu0 0
    %547 = vmatprep.subr.bf16.mxu0 0
    %548 = vmatpush2.bf16.msra.mxu0 0
    %549 = vmatprep.subr.bf16.mxu0 0
    %550 = vmatpush2.bf16.msra.mxu0 0
    %551 = vmatprep.subr.bf16.mxu0 0
    %552 = vmatpush2.bf16.msra.mxu0 0
    %553 = vmatprep.subr.bf16.mxu0 0
    %554 = vmatpush2.bf16.msra.mxu0 0
    %555 = vmatprep.subr.bf16.mxu0 0
    %556 = vmatpush2.bf16.msra.mxu0 0
    %557 = vmatprep.mubr.bf16.mxu0 0
    %558 = vmatmul.mubr.bf16.gmra.mxu0 %v523
    %v559 = vpop.f32.mrf.mxu0
    %v560 = vadd.f32 0.0, %v559
    %v561 = vpop.f32.mrf.mxu0
    %v562 = vpop.f32.mrf.mxu0
    %v563 = vpop.f32.mrf.mxu0
    %564 = vdwg.mxu0
    %v565 = vadd.f32 %v134, %v560
    %v566 = vxor.u32 %v565, 2147483648
    %v567 = vmul.f32 %v566, 1.442695
    %v568 = vpow.pop %v567
    %v569 = vadd.f32 %v568, 1.0
    %v570 = vrcp.pop %v569
    %v571 = vmul.f32 1.0, %v570
    %v572 = vmul.f32 %v571, 2.0
    %v573 = vsub.f32 %v572, 1.0
    %v574 = vmul.f32 %v571, %v511
    %576 = vrot.lane.b32.xlu0 %v573, 64
    %v577 = vpop.permute.xlu0 %576
    %v579 = vmul.f32 %v571, %v577
    %581 = vrot.lane.b32.xlu0 %v579, 32
    %v582 = vpop.permute.xlu0 %581
    %v584 = vadd.f32 %v574, %v582
    %v585 = vtanh.pop %v584
    %587 = vrot.lane.b32.xlu0 %v585, 64
    %v588 = vpop.permute.xlu0 %587
    %v590 = vmul.f32 %v571, %v588
    %v591 = vpack.c.bf16 %v590, %v590
    %593 = vrot.lane.b32.xlu0 %v591, 32
    %v594 = vpop.permute.xlu0 %593
    %v596 = vsel %vm67, %v594, 0
    %598 = vmatprep.subr.bf16.mxu0 0
    %599 = vmatpush1.bf16.msra.mxu0 0
    %600 = vmatprep.subr.bf16.mxu0 0
    %601 = vmatpush1.bf16.msra.mxu0 0
    %602 = vmatprep.subr.bf16.mxu0 0
    %603 = vmatpush1.bf16.msra.mxu0 0
    %604 = vmatprep.subr.bf16.mxu0 0
    %605 = vmatpush1.bf16.msra.mxu0 0
    %606 = vmatprep.subr.bf16.mxu0 0
    %607 = vmatpush1.bf16.msra.mxu0 0
    %608 = vmatprep.subr.bf16.mxu0 0
    %609 = vmatpush1.bf16.msra.mxu0 0
    %610 = vmatprep.subr.bf16.mxu0 0
    %611 = vmatpush1.bf16.msra.mxu0 %v154
    %612 = vmatprep.subr.bf16.mxu0 0
    %613 = vmatpush1.bf16.msra.mxu0 %v153
    %614 = vmatprep.subr.bf16.mxu0 0
    %615 = vmatpush2.bf16.msra.mxu0 0
    %616 = vmatprep.subr.bf16.mxu0 0
    %617 = vmatpush2.bf16.msra.mxu0 0
    %618 = vmatprep.subr.bf16.mxu0 0
    %619 = vmatpush2.bf16.msra.mxu0 0
    %620 = vmatprep.subr.bf16.mxu0 0
    %621 = vmatpush2.bf16.msra.mxu0 0
    %622 = vmatprep.subr.bf16.mxu0 0
    %623 = vmatpush2.bf16.msra.mxu0 0
    %624 = vmatprep.subr.bf16.mxu0 0
    %625 = vmatpush2.bf16.msra.mxu0 0
    %626 = vmatprep.subr.bf16.mxu0 0
    %627 = vmatpush2.bf16.msra.mxu0 0
    %628 = vmatprep.subr.bf16.mxu0 0
    %629 = vmatpush2.bf16.msra.mxu0 0
    %630 = vmatprep.mubr.bf16.mxu0 0
    %631 = vmatmul.mubr.bf16.gmra.mxu0 %v596
    %v632 = vpop.f32.mrf.mxu0
    %v633 = vadd.f32 0.0, %v632
    %v634 = vpop.f32.mrf.mxu0
    %v635 = vpop.f32.mrf.mxu0
    %v636 = vpop.f32.mrf.mxu0
    %637 = vdwg.mxu0
    %v638 = vadd.f32 %v139, %v633
    %v639 = vxor.u32 %v638, 2147483648
    %v640 = vmul.f32 %v639, 1.442695
    %v641 = vpow.pop %v640
    %v642 = vadd.f32 %v641, 1.0
    %v643 = vrcp.pop %v642
    %v644 = vmul.f32 1.0, %v643
    %v645 = vmul.f32 %v644, 2.0
    %v646 = vsub.f32 %v645, 1.0
    %v647 = vmul.f32 %v644, %v584
    %649 = vrot.lane.b32.xlu0 %v646, 64
    %v650 = vpop.permute.xlu0 %649
    %v652 = vmul.f32 %v644, %v650
    %654 = vrot.lane.b32.xlu0 %v652, 32
    %v655 = vpop.permute.xlu0 %654
    %v657 = vadd.f32 %v647, %v655
    %v658 = vtanh.pop %v657
    %660 = vrot.lane.b32.xlu0 %v658, 64
    %v661 = vpop.permute.xlu0 %660
    %v663 = vmul.f32 %v644, %v661
    %v664 = vpack.c.bf16 %v663, %v663
    %666 = vrot.lane.b32.xlu0 %v664, 32
    %v667 = vpop.permute.xlu0 %666
    %v669 = vsel %vm67, %v667, 0
    %671 = vmatprep.subr.bf16.mxu0 0
    %672 = vmatpush1.bf16.msra.mxu0 0
    %673 = vmatprep.subr.bf16.mxu0 0
    %674 = vmatpush1.bf16.msra.mxu0 0
    %675 = vmatprep.subr.bf16.mxu0 0
    %676 = vmatpush1.bf16.msra.mxu0 0
    %677 = vmatprep.subr.bf16.mxu0 0
    %678 = vmatpush1.bf16.msra.mxu0 0
    %679 = vmatprep.subr.bf16.mxu0 0
    %680 = vmatpush1.bf16.msra.mxu0 0
    %681 = vmatprep.subr.bf16.mxu0 0
    %682 = vmatpush1.bf16.msra.mxu0 0
    %683 = vmatprep.subr.bf16.mxu0 0
    %684 = vmatpush1.bf16.msra.mxu0 %v154
    %685 = vmatprep.subr.bf16.mxu0 0
    %686 = vmatpush1.bf16.msra.mxu0 %v153
    %687 = vmatprep.subr.bf16.mxu0 0
    %688 = vmatpush2.bf16.msra.mxu0 0
    %689 = vmatprep.subr.bf16.mxu0 0
    %690 = vmatpush2.bf16.msra.mxu0 0
    %691 = vmatprep.subr.bf16.mxu0 0
    %692 = vmatpush2.bf16.msra.mxu0 0
    %693 = vmatprep.subr.bf16.mxu0 0
    %694 = vmatpush2.bf16.msra.mxu0 0
    %695 = vmatprep.subr.bf16.mxu0 0
    %696 = vmatpush2.bf16.msra.mxu0 0
    %697 = vmatprep.subr.bf16.mxu0 0
    %698 = vmatpush2.bf16.msra.mxu0 0
    %699 = vmatprep.subr.bf16.mxu0 0
    %700 = vmatpush2.bf16.msra.mxu0 0
    %701 = vmatprep.subr.bf16.mxu0 0
    %702 = vmatpush2.bf16.msra.mxu0 0
    %703 = vmatprep.mubr.bf16.mxu0 0
    %704 = vmatmul.mubr.bf16.gmra.mxu0 %v669
    %v705 = vpop.f32.mrf.mxu0
    %v706 = vadd.f32 0.0, %v705
    %v707 = vpop.f32.mrf.mxu0
    %v708 = vpop.f32.mrf.mxu0
    %v709 = vpop.f32.mrf.mxu0
    %710 = vdwg.mxu0
    %v711 = vadd.f32 %v142, %v706
    %v712 = vxor.u32 %v711, 2147483648
    %v713 = vmul.f32 %v712, 1.442695
    %v714 = vpow.pop %v713
    %v715 = vadd.f32 %v714, 1.0
    %v716 = vrcp.pop %v715
    %v717 = vmul.f32 1.0, %v716
    %v718 = vmul.f32 %v717, 2.0
    %v719 = vsub.f32 %v718, 1.0
    %v720 = vmul.f32 %v717, %v657
    %722 = vrot.lane.b32.xlu0 %v719, 64
    %v723 = vpop.permute.xlu0 %722
    %v725 = vmul.f32 %v717, %v723
    %727 = vrot.lane.b32.xlu0 %v725, 32
    %v728 = vpop.permute.xlu0 %727
    %v730 = vadd.f32 %v720, %v728
    %v731 = vtanh.pop %v730
    %733 = vrot.lane.b32.xlu0 %v731, 64
    %v734 = vpop.permute.xlu0 %733
    %v736 = vmul.f32 %v717, %v734
    %v737 = vpack.c.bf16 %v298, %v225
    %v738 = vpack.c.bf16 %v444, %v371
    %v739 = vpack.c.bf16 %v590, %v517
    %v740 = vpack.c.bf16 %v736, %v663
    %v741 = vld [vmem:[%s4] sm:$0xf]
    %v742 = vld [vmem:[%s4 + $0x4] sm:$0xf]
    %v743 = vld [vmem:[%s4 + $0x8] sm:$0xf]
    %v744 = vld [vmem:[%s4 + $0xc] sm:$0xf]
    %v745 = vld [vmem:[%s5] sm:$0xf]
    %v746 = vld [vmem:[%s5 + $0x4] sm:$0xf]
    %v747 = vld [vmem:[%s5 + $0x8] sm:$0xf]
    %v748 = vld [vmem:[%s5 + $0xc] sm:$0xf]
    %v749 = vld [vmem:[%s6] sm:$0x1]
    %v751 = vlaneseq
    %v752 = vshrl.u32 %v751, 7
    %v753 = vsub.s32 0, %v752
    %v754 = vrot.slane %v749, %v753
    %760 = vrot.lane.b32.xlu0 %v737, 32
    %v761 = vpop.permute.xlu0 %760
    %762 = vrot.lane.b32.xlu0 %v738, 32
    %v763 = vpop.permute.xlu0 %762
    %764 = vrot.lane.b32.xlu0 %v739, 32
    %v765 = vpop.permute.xlu0 %764
    %766 = vrot.lane.b32.xlu0 %v740, 32
    %v767 = vpop.permute.xlu0 %766
    %v772 = vunpack.c.l.b16 %v741
    %v773 = vunpack.c.l.b16 %v742
    %v774 = vunpack.c.l.b16 %v743
    %v775 = vunpack.c.l.b16 %v744
    %v776 = vpack.c.b16 %v773, %v772
    %v777 = vpack.c.b16 %v775, %v774
    %v781 = vsel %vm67, %v761, 0
    %v784 = vsel %vm67, %v763, 0
    %v787 = vsel %vm67, %v765, 0
    %v790 = vsel %vm67, %v767, 0
    %792 = vmatprep.subr.bf16.mxu0 0
    %793 = vmatpush1.bf16.msra.mxu0 0
    %794 = vmatprep.subr.bf16.mxu0 0
    %795 = vmatpush1.bf16.msra.mxu0 0
    %796 = vmatprep.subr.bf16.mxu0 0
    %797 = vmatpush1.bf16.msra.mxu0 0
    %798 = vmatprep.subr.bf16.mxu0 0
    %799 = vmatpush1.bf16.msra.mxu0 0
    %800 = vmatprep.subr.bf16.mxu0 0
    %801 = vmatpush1.bf16.msra.mxu0 0
    %802 = vmatprep.subr.bf16.mxu0 0
    %803 = vmatpush1.bf16.msra.mxu0 0
    %804 = vmatprep.subr.bf16.mxu0 0
    %805 = vmatpush1.bf16.msra.mxu0 %v777
    %806 = vmatprep.subr.bf16.mxu0 0
    %807 = vmatpush1.bf16.msra.mxu0 %v776
    %808 = vmatprep.subr.bf16.mxu0 0
    %809 = vmatpush2.bf16.msra.mxu0 0
    %810 = vmatprep.subr.bf16.mxu0 0
    %811 = vmatpush2.bf16.msra.mxu0 0
    %812 = vmatprep.subr.bf16.mxu0 0
    %813 = vmatpush2.bf16.msra.mxu0 0
    %814 = vmatprep.subr.bf16.mxu0 0
    %815 = vmatpush2.bf16.msra.mxu0 0
    %816 = vmatprep.subr.bf16.mxu0 0
    %817 = vmatpush2.bf16.msra.mxu0 0
    %818 = vmatprep.subr.bf16.mxu0 0
    %819 = vmatpush2.bf16.msra.mxu0 0
    %820 = vmatprep.subr.bf16.mxu0 0
    %821 = vmatpush2.bf16.msra.mxu0 0
    %822 = vmatprep.subr.bf16.mxu0 0
    %823 = vmatpush2.bf16.msra.mxu0 0
    %824 = vmatprep.mubr.bf16.mxu0 0
    %825 = vmatmul.mubr.bf16.gmra.mxu0 %v781
    %v826 = vpop.f32.mrf.mxu0
    %v827 = vadd.f32 %v754, %v826
    %v828 = vpop.f32.mrf.mxu0
    %v829 = vpop.f32.mrf.mxu0
    %v830 = vadd.f32 %v754, %v829
    %v831 = vpop.f32.mrf.mxu0
    %832 = vmatprep.mubr.bf16.mxu0 0
    %833 = vmatmul.mubr.bf16.gmra.mxu0 %v784
    %v834 = vpop.f32.mrf.mxu0
    %v835 = vadd.f32 %v754, %v834
    %v836 = vpop.f32.mrf.mxu0
    %v837 = vpop.f32.mrf.mxu0
    %v838 = vadd.f32 %v754, %v837
    %v839 = vpop.f32.mrf.mxu0
    %840 = vmatprep.mubr.bf16.mxu0 0
    %841 = vmatmul.mubr.bf16.gmra.mxu0 %v787
    %v842 = vpop.f32.mrf.mxu0
    %v843 = vadd.f32 %v754, %v842
    %v844 = vpop.f32.mrf.mxu0
    %v845 = vpop.f32.mrf.mxu0
    %v846 = vadd.f32 %v754, %v845
    %v847 = vpop.f32.mrf.mxu0
    %848 = vmatprep.mubr.bf16.mxu0 0
    %849 = vmatmul.mubr.bf16.gmra.mxu0 %v790
    %v850 = vpop.f32.mrf.mxu0
    %v851 = vadd.f32 %v754, %v850
    %v852 = vpop.f32.mrf.mxu0
    %v853 = vpop.f32.mrf.mxu0
    %v854 = vadd.f32 %v754, %v853
    %v855 = vpop.f32.mrf.mxu0
    %856 = vdwg.mxu0
    %v861 = vunpack.c.l.b16 %v745
    %v862 = vunpack.c.l.b16 %v746
    %v863 = vunpack.c.l.b16 %v747
    %v864 = vunpack.c.l.b16 %v748
    %v865 = vpack.c.b16 %v862, %v861
    %v866 = vpack.c.b16 %v864, %v863
    %869 = vmatprep.subr.bf16.mxu0 0
    %870 = vmatpush1.bf16.msra.mxu0 0
    %871 = vmatprep.subr.bf16.mxu0 0
    %872 = vmatpush1.bf16.msra.mxu0 0
    %873 = vmatprep.subr.bf16.mxu0 0
    %874 = vmatpush1.bf16.msra.mxu0 0
    %875 = vmatprep.subr.bf16.mxu0 0
    %876 = vmatpush1.bf16.msra.mxu0 0
    %877 = vmatprep.subr.bf16.mxu0 0
    %878 = vmatpush1.bf16.msra.mxu0 0
    %879 = vmatprep.subr.bf16.mxu0 0
    %880 = vmatpush1.bf16.msra.mxu0 0
    %881 = vmatprep.subr.bf16.mxu0 0
    %882 = vmatpush1.bf16.msra.mxu0 %v866
    %883 = vmatprep.subr.bf16.mxu0 0
    %884 = vmatpush1.bf16.msra.mxu0 %v865
    %885 = vmatprep.subr.bf16.mxu0 0
    %886 = vmatpush2.bf16.msra.mxu0 0
    %887 = vmatprep.subr.bf16.mxu0 0
    %888 = vmatpush2.bf16.msra.mxu0 0
    %889 = vmatprep.subr.bf16.mxu0 0
    %890 = vmatpush2.bf16.msra.mxu0 0
    %891 = vmatprep.subr.bf16.mxu0 0
    %892 = vmatpush2.bf16.msra.mxu0 0
    %893 = vmatprep.subr.bf16.mxu0 0
    %894 = vmatpush2.bf16.msra.mxu0 0
    %895 = vmatprep.subr.bf16.mxu0 0
    %896 = vmatpush2.bf16.msra.mxu0 0
    %897 = vmatprep.subr.bf16.mxu0 0
    %898 = vmatpush2.bf16.msra.mxu0 0
    %899 = vmatprep.subr.bf16.mxu0 0
    %900 = vmatpush2.bf16.msra.mxu0 0
    %901 = vmatprep.mubr.bf16.mxu0 0
    %902 = vmatmul.mubr.bf16.gmra.mxu0 %v158
    %v903 = vpop.f32.mrf.mxu0
    %v904 = vadd.f32 0.0, %v903
    %v905 = vpop.f32.mrf.mxu0
    %v906 = vpop.f32.mrf.mxu0
    %v907 = vpop.f32.mrf.mxu0
    %908 = vdwg.mxu0
    %v909 = vadd.f32 %v827, %v904
    %v910 = vxor.u32 %v909, 2147483648
    %v911 = vmul.f32 %v910, 1.442695
    %v912 = vpow.pop %v911
    %v913 = vadd.f32 %v912, 1.0
    %v914 = vrcp.pop %v913
    %v915 = vmul.f32 1.0, %v914
    %v916 = vmul.f32 %v915, 2.0
    %v917 = vsub.f32 %v916, 1.0
    %v918 = vmul.f32 %v915, 0.0
    %920 = vrot.lane.b32.xlu0 %v917, 64
    %v921 = vpop.permute.xlu0 %920
    %v923 = vmul.f32 %v915, %v921
    %925 = vrot.lane.b32.xlu0 %v923, 32
    %v926 = vpop.permute.xlu0 %925
    %v928 = vadd.f32 %v918, %v926
    %v929 = vtanh.pop %v928
    %931 = vrot.lane.b32.xlu0 %v929, 64
    %v932 = vpop.permute.xlu0 %931
    %v934 = vmul.f32 %v915, %v932
    %v935 = vpack.c.bf16 %v934, %v934
    %937 = vrot.lane.b32.xlu0 %v935, 32
    %v938 = vpop.permute.xlu0 %937
    %v940 = vsel %vm67, %v938, 0
    %942 = vmatprep.subr.bf16.mxu0 0
    %943 = vmatpush1.bf16.msra.mxu0 0
    %944 = vmatprep.subr.bf16.mxu0 0
    %945 = vmatpush1.bf16.msra.mxu0 0
    %946 = vmatprep.subr.bf16.mxu0 0
    %947 = vmatpush1.bf16.msra.mxu0 0
    %948 = vmatprep.subr.bf16.mxu0 0
    %949 = vmatpush1.bf16.msra.mxu0 0
    %950 = vmatprep.subr.bf16.mxu0 0
    %951 = vmatpush1.bf16.msra.mxu0 0
    %952 = vmatprep.subr.bf16.mxu0 0
    %953 = vmatpush1.bf16.msra.mxu0 0
    %954 = vmatprep.subr.bf16.mxu0 0
    %955 = vmatpush1.bf16.msra.mxu0 %v866
    %956 = vmatprep.subr.bf16.mxu0 0
    %957 = vmatpush1.bf16.msra.mxu0 %v865
    %958 = vmatprep.subr.bf16.mxu0 0
    %959 = vmatpush2.bf16.msra.mxu0 0
    %960 = vmatprep.subr.bf16.mxu0 0
    %961 = vmatpush2.bf16.msra.mxu0 0
    %962 = vmatprep.subr.bf16.mxu0 0
    %963 = vmatpush2.bf16.msra.mxu0 0
    %964 = vmatprep.subr.bf16.mxu0 0
    %965 = vmatpush2.bf16.msra.mxu0 0
    %966 = vmatprep.subr.bf16.mxu0 0
    %967 = vmatpush2.bf16.msra.mxu0 0
    %968 = vmatprep.subr.bf16.mxu0 0
    %969 = vmatpush2.bf16.msra.mxu0 0
    %970 = vmatprep.subr.bf16.mxu0 0
    %971 = vmatpush2.bf16.msra.mxu0 0
    %972 = vmatprep.subr.bf16.mxu0 0
    %973 = vmatpush2.bf16.msra.mxu0 0
    %974 = vmatprep.mubr.bf16.mxu0 0
    %975 = vmatmul.mubr.bf16.gmra.mxu0 %v940
    %v976 = vpop.f32.mrf.mxu0
    %v977 = vadd.f32 0.0, %v976
    %v978 = vpop.f32.mrf.mxu0
    %v979 = vpop.f32.mrf.mxu0
    %v980 = vpop.f32.mrf.mxu0
    %981 = vdwg.mxu0
    %v982 = vadd.f32 %v830, %v977
    %v983 = vxor.u32 %v982, 2147483648
    %v984 = vmul.f32 %v983, 1.442695
    %v985 = vpow.pop %v984
    %v986 = vadd.f32 %v985, 1.0
    %v987 = vrcp.pop %v986
    %v988 = vmul.f32 1.0, %v987
    %v989 = vmul.f32 %v988, 2.0
    %v990 = vsub.f32 %v989, 1.0
    %v991 = vmul.f32 %v988, %v928
    %993 = vrot.lane.b32.xlu0 %v990, 64
    %v994 = vpop.permute.xlu0 %993
    %v996 = vmul.f32 %v988, %v994
    %998 = vrot.lane.b32.xlu0 %v996, 32
    %v999 = vpop.permute.xlu0 %998
    %v1001 = vadd.f32 %v991, %v999
    %v1002 = vtanh.pop %v1001
    %1004 = vrot.lane.b32.xlu0 %v1002, 64
    %v1005 = vpop.permute.xlu0 %1004
    %v1007 = vmul.f32 %v988, %v1005
    %v1008 = vpack.c.bf16 %v1007, %v1007
    %1010 = vrot.lane.b32.xlu0 %v1008, 32
    %v1011 = vpop.permute.xlu0 %1010
    %v1013 = vsel %vm67, %v1011, 0
    %1015 = vmatprep.subr.bf16.mxu0 0
    %1016 = vmatpush1.bf16.msra.mxu0 0
    %1017 = vmatprep.subr.bf16.mxu0 0
    %1018 = vmatpush1.bf16.msra.mxu0 0
    %1019 = vmatprep.subr.bf16.mxu0 0
    %1020 = vmatpush1.bf16.msra.mxu0 0
    %1021 = vmatprep.subr.bf16.mxu0 0
    %1022 = vmatpush1.bf16.msra.mxu0 0
    %1023 = vmatprep.subr.bf16.mxu0 0
    %1024 = vmatpush1.bf16.msra.mxu0 0
    %1025 = vmatprep.subr.bf16.mxu0 0
    %1026 = vmatpush1.bf16.msra.mxu0 0
    %1027 = vmatprep.subr.bf16.mxu0 0
    %1028 = vmatpush1.bf16.msra.mxu0 %v866
    %1029 = vmatprep.subr.bf16.mxu0 0
    %1030 = vmatpush1.bf16.msra.mxu0 %v865
    %1031 = vmatprep.subr.bf16.mxu0 0
    %1032 = vmatpush2.bf16.msra.mxu0 0
    %1033 = vmatprep.subr.bf16.mxu0 0
    %1034 = vmatpush2.bf16.msra.mxu0 0
    %1035 = vmatprep.subr.bf16.mxu0 0
    %1036 = vmatpush2.bf16.msra.mxu0 0
    %1037 = vmatprep.subr.bf16.mxu0 0
    %1038 = vmatpush2.bf16.msra.mxu0 0
    %1039 = vmatprep.subr.bf16.mxu0 0
    %1040 = vmatpush2.bf16.msra.mxu0 0
    %1041 = vmatprep.subr.bf16.mxu0 0
    %1042 = vmatpush2.bf16.msra.mxu0 0
    %1043 = vmatprep.subr.bf16.mxu0 0
    %1044 = vmatpush2.bf16.msra.mxu0 0
    %1045 = vmatprep.subr.bf16.mxu0 0
    %1046 = vmatpush2.bf16.msra.mxu0 0
    %1047 = vmatprep.mubr.bf16.mxu0 0
    %1048 = vmatmul.mubr.bf16.gmra.mxu0 %v1013
    %v1049 = vpop.f32.mrf.mxu0
    %v1050 = vadd.f32 0.0, %v1049
    %v1051 = vpop.f32.mrf.mxu0
    %v1052 = vpop.f32.mrf.mxu0
    %v1053 = vpop.f32.mrf.mxu0
    %1054 = vdwg.mxu0
    %v1055 = vadd.f32 %v835, %v1050
    %v1056 = vxor.u32 %v1055, 2147483648
    %v1057 = vmul.f32 %v1056, 1.442695
    %v1058 = vpow.pop %v1057
    %v1059 = vadd.f32 %v1058, 1.0
    %v1060 = vrcp.pop %v1059
    %v1061 = vmul.f32 1.0, %v1060
    %v1062 = vmul.f32 %v1061, 2.0
    %v1063 = vsub.f32 %v1062, 1.0
    %v1064 = vmul.f32 %v1061, %v1001
    %1066 = vrot.lane.b32.xlu0 %v1063, 64
    %v1067 = vpop.permute.xlu0 %1066
    %v1069 = vmul.f32 %v1061, %v1067
    %1071 = vrot.lane.b32.xlu0 %v1069, 32
    %v1072 = vpop.permute.xlu0 %1071
    %v1074 = vadd.f32 %v1064, %v1072
    %v1075 = vtanh.pop %v1074
    %1077 = vrot.lane.b32.xlu0 %v1075, 64
    %v1078 = vpop.permute.xlu0 %1077
    %v1080 = vmul.f32 %v1061, %v1078
    %v1081 = vpack.c.bf16 %v1080, %v1080
    %1083 = vrot.lane.b32.xlu0 %v1081, 32
    %v1084 = vpop.permute.xlu0 %1083
    %v1086 = vsel %vm67, %v1084, 0
    %1088 = vmatprep.subr.bf16.mxu0 0
    %1089 = vmatpush1.bf16.msra.mxu0 0
    %1090 = vmatprep.subr.bf16.mxu0 0
    %1091 = vmatpush1.bf16.msra.mxu0 0
    %1092 = vmatprep.subr.bf16.mxu0 0
    %1093 = vmatpush1.bf16.msra.mxu0 0
    %1094 = vmatprep.subr.bf16.mxu0 0
    %1095 = vmatpush1.bf16.msra.mxu0 0
    %1096 = vmatprep.subr.bf16.mxu0 0
    %1097 = vmatpush1.bf16.msra.mxu0 0
    %1098 = vmatprep.subr.bf16.mxu0 0
    %1099 = vmatpush1.bf16.msra.mxu0 0
    %1100 = vmatprep.subr.bf16.mxu0 0
    %1101 = vmatpush1.bf16.msra.mxu0 %v866
    %1102 = vmatprep.subr.bf16.mxu0 0
    %1103 = vmatpush1.bf16.msra.mxu0 %v865
    %1104 = vmatprep.subr.bf16.mxu0 0
    %1105 = vmatpush2.bf16.msra.mxu0 0
    %1106 = vmatprep.subr.bf16.mxu0 0
    %1107 = vmatpush2.bf16.msra.mxu0 0
    %1108 = vmatprep.subr.bf16.mxu0 0
    %1109 = vmatpush2.bf16.msra.mxu0 0
    %1110 = vmatprep.subr.bf16.mxu0 0
    %1111 = vmatpush2.bf16.msra.mxu0 0
    %1112 = vmatprep.subr.bf16.mxu0 0
    %1113 = vmatpush2.bf16.msra.mxu0 0
    %1114 = vmatprep.subr.bf16.mxu0 0
    %1115 = vmatpush2.bf16.msra.mxu0 0
    %1116 = vmatprep.subr.bf16.mxu0 0
    %1117 = vmatpush2.bf16.msra.mxu0 0
    %1118 = vmatprep.subr.bf16.mxu0 0
    %1119 = vmatpush2.bf16.msra.mxu0 0
    %1120 = vmatprep.mubr.bf16.mxu0 0
    %1121 = vmatmul.mubr.bf16.gmra.mxu0 %v1086
    %v1122 = vpop.f32.mrf.mxu0
    %v1123 = vadd.f32 0.0, %v1122
    %v1124 = vpop.f32.mrf.mxu0
    %v1125 = vpop.f32.mrf.mxu0
    %v1126 = vpop.f32.mrf.mxu0
    %1127 = vdwg.mxu0
    %v1128 = vadd.f32 %v838, %v1123
    %v1129 = vxor.u32 %v1128, 2147483648
    %v1130 = vmul.f32 %v1129, 1.442695
    %v1131 = vpow.pop %v1130
    %v1132 = vadd.f32 %v1131, 1.0
    %v1133 = vrcp.pop %v1132
    %v1134 = vmul.f32 1.0, %v1133
    %v1135 = vmul.f32 %v1134, 2.0
    %v1136 = vsub.f32 %v1135, 1.0
    %v1137 = vmul.f32 %v1134, %v1074
    %1139 = vrot.lane.b32.xlu0 %v1136, 64
    %v1140 = vpop.permute.xlu0 %1139
    %v1142 = vmul.f32 %v1134, %v1140
    %1144 = vrot.lane.b32.xlu0 %v1142, 32
    %v1145 = vpop.permute.xlu0 %1144
    %v1147 = vadd.f32 %v1137, %v1145
    %v1148 = vtanh.pop %v1147
    %1150 = vrot.lane.b32.xlu0 %v1148, 64
    %v1151 = vpop.permute.xlu0 %1150
    %v1153 = vmul.f32 %v1134, %v1151
    %v1154 = vpack.c.bf16 %v1153, %v1153
    %1156 = vrot.lane.b32.xlu0 %v1154, 32
    %v1157 = vpop.permute.xlu0 %1156
    %v1159 = vsel %vm67, %v1157, 0
    %1161 = vmatprep.subr.bf16.mxu0 0
    %1162 = vmatpush1.bf16.msra.mxu0 0
    %1163 = vmatprep.subr.bf16.mxu0 0
    %1164 = vmatpush1.bf16.msra.mxu0 0
    %1165 = vmatprep.subr.bf16.mxu0 0
    %1166 = vmatpush1.bf16.msra.mxu0 0
    %1167 = vmatprep.subr.bf16.mxu0 0
    %1168 = vmatpush1.bf16.msra.mxu0 0
    %1169 = vmatprep.subr.bf16.mxu0 0
    %1170 = vmatpush1.bf16.msra.mxu0 0
    %1171 = vmatprep.subr.bf16.mxu0 0
    %1172 = vmatpush1.bf16.msra.mxu0 0
    %1173 = vmatprep.subr.bf16.mxu0 0
    %1174 = vmatpush1.bf16.msra.mxu0 %v866
    %1175 = vmatprep.subr.bf16.mxu0 0
    %1176 = vmatpush1.bf16.msra.mxu0 %v865
    %1177 = vmatprep.subr.bf16.mxu0 0
    %1178 = vmatpush2.bf16.msra.mxu0 0
    %1179 = vmatprep.subr.bf16.mxu0 0
    %1180 = vmatpush2.bf16.msra.mxu0 0
    %1181 = vmatprep.subr.bf16.mxu0 0
    %1182 = vmatpush2.bf16.msra.mxu0 0
    %1183 = vmatprep.subr.bf16.mxu0 0
    %1184 = vmatpush2.bf16.msra.mxu0 0
    %1185 = vmatprep.subr.bf16.mxu0 0
    %1186 = vmatpush2.bf16.msra.mxu0 0
    %1187 = vmatprep.subr.bf16.mxu0 0
    %1188 = vmatpush2.bf16.msra.mxu0 0
    %1189 = vmatprep.subr.bf16.mxu0 0
    %1190 = vmatpush2.bf16.msra.mxu0 0
    %1191 = vmatprep.subr.bf16.mxu0 0
    %1192 = vmatpush2.bf16.msra.mxu0 0
    %1193 = vmatprep.mubr.bf16.mxu0 0
    %1194 = vmatmul.mubr.bf16.gmra.mxu0 %v1159
    %v1195 = vpop.f32.mrf.mxu0
    %v1196 = vadd.f32 0.0, %v1195
    %v1197 = vpop.f32.mrf.mxu0
    %v1198 = vpop.f32.mrf.mxu0
    %v1199 = vpop.f32.mrf.mxu0
    %1200 = vdwg.mxu0
    %v1201 = vadd.f32 %v843, %v1196
    %v1202 = vxor.u32 %v1201, 2147483648
    %v1203 = vmul.f32 %v1202, 1.442695
    %v1204 = vpow.pop %v1203
    %v1205 = vadd.f32 %v1204, 1.0
    %v1206 = vrcp.pop %v1205
    %v1207 = vmul.f32 1.0, %v1206
    %v1208 = vmul.f32 %v1207, 2.0
    %v1209 = vsub.f32 %v1208, 1.0
    %v1210 = vmul.f32 %v1207, %v1147
    %1212 = vrot.lane.b32.xlu0 %v1209, 64
    %v1213 = vpop.permute.xlu0 %1212
    %v1215 = vmul.f32 %v1207, %v1213
    %1217 = vrot.lane.b32.xlu0 %v1215, 32
    %v1218 = vpop.permute.xlu0 %1217
    %v1220 = vadd.f32 %v1210, %v1218
    %v1221 = vtanh.pop %v1220
    %1223 = vrot.lane.b32.xlu0 %v1221, 64
    %v1224 = vpop.permute.xlu0 %1223
    %v1226 = vmul.f32 %v1207, %v1224
    %v1227 = vpack.c.bf16 %v1226, %v1226
    %1229 = vrot.lane.b32.xlu0 %v1227, 32
    %v1230 = vpop.permute.xlu0 %1229
    %v1232 = vsel %vm67, %v1230, 0
    %1234 = vmatprep.subr.bf16.mxu0 0
    %1235 = vmatpush1.bf16.msra.mxu0 0
    %1236 = vmatprep.subr.bf16.mxu0 0
    %1237 = vmatpush1.bf16.msra.mxu0 0
    %1238 = vmatprep.subr.bf16.mxu0 0
    %1239 = vmatpush1.bf16.msra.mxu0 0
    %1240 = vmatprep.subr.bf16.mxu0 0
    %1241 = vmatpush1.bf16.msra.mxu0 0
    %1242 = vmatprep.subr.bf16.mxu0 0
    %1243 = vmatpush1.bf16.msra.mxu0 0
    %1244 = vmatprep.subr.bf16.mxu0 0
    %1245 = vmatpush1.bf16.msra.mxu0 0
    %1246 = vmatprep.subr.bf16.mxu0 0
    %1247 = vmatpush1.bf16.msra.mxu0 %v866
    %1248 = vmatprep.subr.bf16.mxu0 0
    %1249 = vmatpush1.bf16.msra.mxu0 %v865
    %1250 = vmatprep.subr.bf16.mxu0 0
    %1251 = vmatpush2.bf16.msra.mxu0 0
    %1252 = vmatprep.subr.bf16.mxu0 0
    %1253 = vmatpush2.bf16.msra.mxu0 0
    %1254 = vmatprep.subr.bf16.mxu0 0
    %1255 = vmatpush2.bf16.msra.mxu0 0
    %1256 = vmatprep.subr.bf16.mxu0 0
    %1257 = vmatpush2.bf16.msra.mxu0 0
    %1258 = vmatprep.subr.bf16.mxu0 0
    %1259 = vmatpush2.bf16.msra.mxu0 0
    %1260 = vmatprep.subr.bf16.mxu0 0
    %1261 = vmatpush2.bf16.msra.mxu0 0
    %1262 = vmatprep.subr.bf16.mxu0 0
    %1263 = vmatpush2.bf16.msra.mxu0 0
    %1264 = vmatprep.subr.bf16.mxu0 0
    %1265 = vmatpush2.bf16.msra.mxu0 0
    %1266 = vmatprep.mubr.bf16.mxu0 0
    %1267 = vmatmul.mubr.bf16.gmra.mxu0 %v1232
    %v1268 = vpop.f32.mrf.mxu0
    %v1269 = vadd.f32 0.0, %v1268
    %v1270 = vpop.f32.mrf.mxu0
    %v1271 = vpop.f32.mrf.mxu0
    %v1272 = vpop.f32.mrf.mxu0
    %1273 = vdwg.mxu0
    %v1274 = vadd.f32 %v846, %v1269
    %v1275 = vxor.u32 %v1274, 2147483648
    %v1276 = vmul.f32 %v1275, 1.442695
    %v1277 = vpow.pop %v1276
    %v1278 = vadd.f32 %v1277, 1.0
    %v1279 = vrcp.pop %v1278
    %v1280 = vmul.f32 1.0, %v1279
    %v1281 = vmul.f32 %v1280, 2.0
    %v1282 = vsub.f32 %v1281, 1.0
    %v1283 = vmul.f32 %v1280, %v1220
    %1285 = vrot.lane.b32.xlu0 %v1282, 64
    %v1286 = vpop.permute.xlu0 %1285
    %v1288 = vmul.f32 %v1280, %v1286
    %1290 = vrot.lane.b32.xlu0 %v1288, 32
    %v1291 = vpop.permute.xlu0 %1290
    %v1293 = vadd.f32 %v1283, %v1291
    %v1294 = vtanh.pop %v1293
    %1296 = vrot.lane.b32.xlu0 %v1294, 64
    %v1297 = vpop.permute.xlu0 %1296
    %v1299 = vmul.f32 %v1280, %v1297
    %v1300 = vpack.c.bf16 %v1299, %v1299
    %1302 = vrot.lane.b32.xlu0 %v1300, 32
    %v1303 = vpop.permute.xlu0 %1302
    %v1305 = vsel %vm67, %v1303, 0
    %1307 = vmatprep.subr.bf16.mxu0 0
    %1308 = vmatpush1.bf16.msra.mxu0 0
    %1309 = vmatprep.subr.bf16.mxu0 0
    %1310 = vmatpush1.bf16.msra.mxu0 0
    %1311 = vmatprep.subr.bf16.mxu0 0
    %1312 = vmatpush1.bf16.msra.mxu0 0
    %1313 = vmatprep.subr.bf16.mxu0 0
    %1314 = vmatpush1.bf16.msra.mxu0 0
    %1315 = vmatprep.subr.bf16.mxu0 0
    %1316 = vmatpush1.bf16.msra.mxu0 0
    %1317 = vmatprep.subr.bf16.mxu0 0
    %1318 = vmatpush1.bf16.msra.mxu0 0
    %1319 = vmatprep.subr.bf16.mxu0 0
    %1320 = vmatpush1.bf16.msra.mxu0 %v866
    %1321 = vmatprep.subr.bf16.mxu0 0
    %1322 = vmatpush1.bf16.msra.mxu0 %v865
    %1323 = vmatprep.subr.bf16.mxu0 0
    %1324 = vmatpush2.bf16.msra.mxu0 0
    %1325 = vmatprep.subr.bf16.mxu0 0
    %1326 = vmatpush2.bf16.msra.mxu0 0
    %1327 = vmatprep.subr.bf16.mxu0 0
    %1328 = vmatpush2.bf16.msra.mxu0 0
    %1329 = vmatprep.subr.bf16.mxu0 0
    %1330 = vmatpush2.bf16.msra.mxu0 0
    %1331 = vmatprep.subr.bf16.mxu0 0
    %1332 = vmatpush2.bf16.msra.mxu0 0
    %1333 = vmatprep.subr.bf16.mxu0 0
    %1334 = vmatpush2.bf16.msra.mxu0 0
    %1335 = vmatprep.subr.bf16.mxu0 0
    %1336 = vmatpush2.bf16.msra.mxu0 0
    %1337 = vmatprep.subr.bf16.mxu0 0
    %1338 = vmatpush2.bf16.msra.mxu0 0
    %1339 = vmatprep.mubr.bf16.mxu0 0
    %1340 = vmatmul.mubr.bf16.gmra.mxu0 %v1305
    %v1341 = vpop.f32.mrf.mxu0
    %v1342 = vadd.f32 0.0, %v1341
    %v1343 = vpop.f32.mrf.mxu0
    %v1344 = vpop.f32.mrf.mxu0
    %v1345 = vpop.f32.mrf.mxu0
    %1346 = vdwg.mxu0
    %v1347 = vadd.f32 %v851, %v1342
    %v1348 = vxor.u32 %v1347, 2147483648
    %v1349 = vmul.f32 %v1348, 1.442695
    %v1350 = vpow.pop %v1349
    %v1351 = vadd.f32 %v1350, 1.0
    %v1352 = vrcp.pop %v1351
    %v1353 = vmul.f32 1.0, %v1352
    %v1354 = vmul.f32 %v1353, 2.0
    %v1355 = vsub.f32 %v1354, 1.0
    %v1356 = vmul.f32 %v1353, %v1293
    %1358 = vrot.lane.b32.xlu0 %v1355, 64
    %v1359 = vpop.permute.xlu0 %1358
    %v1361 = vmul.f32 %v1353, %v1359
    %1363 = vrot.lane.b32.xlu0 %v1361, 32
    %v1364 = vpop.permute.xlu0 %1363
    %v1366 = vadd.f32 %v1356, %v1364
    %v1367 = vtanh.pop %v1366
    %1369 = vrot.lane.b32.xlu0 %v1367, 64
    %v1370 = vpop.permute.xlu0 %1369
    %v1372 = vmul.f32 %v1353, %v1370
    %v1373 = vpack.c.bf16 %v1372, %v1372
    %1375 = vrot.lane.b32.xlu0 %v1373, 32
    %v1376 = vpop.permute.xlu0 %1375
    %v1378 = vsel %vm67, %v1376, 0
    %1380 = vmatprep.subr.bf16.mxu0 0
    %1381 = vmatpush1.bf16.msra.mxu0 0
    %1382 = vmatprep.subr.bf16.mxu0 0
    %1383 = vmatpush1.bf16.msra.mxu0 0
    %1384 = vmatprep.subr.bf16.mxu0 0
    %1385 = vmatpush1.bf16.msra.mxu0 0
    %1386 = vmatprep.subr.bf16.mxu0 0
    %1387 = vmatpush1.bf16.msra.mxu0 0
    %1388 = vmatprep.subr.bf16.mxu0 0
    %1389 = vmatpush1.bf16.msra.mxu0 0
    %1390 = vmatprep.subr.bf16.mxu0 0
    %1391 = vmatpush1.bf16.msra.mxu0 0
    %1392 = vmatprep.subr.bf16.mxu0 0
    %1393 = vmatpush1.bf16.msra.mxu0 %v866
    %1394 = vmatprep.subr.bf16.mxu0 0
    %1395 = vmatpush1.bf16.msra.mxu0 %v865
    %1396 = vmatprep.subr.bf16.mxu0 0
    %1397 = vmatpush2.bf16.msra.mxu0 0
    %1398 = vmatprep.subr.bf16.mxu0 0
    %1399 = vmatpush2.bf16.msra.mxu0 0
    %1400 = vmatprep.subr.bf16.mxu0 0
    %1401 = vmatpush2.bf16.msra.mxu0 0
    %1402 = vmatprep.subr.bf16.mxu0 0
    %1403 = vmatpush2.bf16.msra.mxu0 0
    %1404 = vmatprep.subr.bf16.mxu0 0
    %1405 = vmatpush2.bf16.msra.mxu0 0
    %1406 = vmatprep.subr.bf16.mxu0 0
    %1407 = vmatpush2.bf16.msra.mxu0 0
    %1408 = vmatprep.subr.bf16.mxu0 0
    %1409 = vmatpush2.bf16.msra.mxu0 0
    %1410 = vmatprep.subr.bf16.mxu0 0
    %1411 = vmatpush2.bf16.msra.mxu0 0
    %1412 = vmatprep.mubr.bf16.mxu0 0
    %1413 = vmatmul.mubr.bf16.gmra.mxu0 %v1378
    %v1414 = vpop.f32.mrf.mxu0
    %v1415 = vadd.f32 0.0, %v1414
    %v1416 = vpop.f32.mrf.mxu0
    %v1417 = vpop.f32.mrf.mxu0
    %v1418 = vpop.f32.mrf.mxu0
    %1419 = vdwg.mxu0
    %v1420 = vadd.f32 %v854, %v1415
    %v1421 = vxor.u32 %v1420, 2147483648
    %v1422 = vmul.f32 %v1421, 1.442695
    %v1423 = vpow.pop %v1422
    %v1424 = vadd.f32 %v1423, 1.0
    %v1425 = vrcp.pop %v1424
    %v1426 = vmul.f32 1.0, %v1425
    %v1427 = vmul.f32 %v1426, 2.0
    %v1428 = vsub.f32 %v1427, 1.0
    %v1429 = vmul.f32 %v1426, %v1366
    %1431 = vrot.lane.b32.xlu0 %v1428, 64
    %v1432 = vpop.permute.xlu0 %1431
    %v1434 = vmul.f32 %v1426, %v1432
    %1436 = vrot.lane.b32.xlu0 %v1434, 32
    %v1437 = vpop.permute.xlu0 %1436
    %v1439 = vadd.f32 %v1429, %v1437
    %v1440 = vtanh.pop %v1439
    %1442 = vrot.lane.b32.xlu0 %v1440, 64
    %v1443 = vpop.permute.xlu0 %1442
    %v1445 = vmul.f32 %v1426, %v1443
    %v1446 = vtanh.pop %v1445
    %1448 = vrot.lane.b32.xlu0 %v1446, 32
    %v1449 = vpop.permute.xlu0 %1448
    %1451 = vst.msk [vmem:[#allocation2] sm:$0xff] %vm67, %v1449
    // Predicated region
    $region30: #{lstm_model_forward.1} parent=1 // pred_check
      _
    $region31: #{lstm_model_forward.1} parent=1 // pred_check_branch
      %1453 = sbr.rel (0) target = $region33
    $region32: #{lstm_model_forward.1} parent=1 // pred_region
      %s1455 = ssub.s32 128, 128
      %1456 = vsyncadd [#allocation3], %s1455
      %s1458 = sshll.u32 [#allocation2], 4
      %s1459 = int_to_ptr.vmem [resolvable:$true] %s1458
      %1461 = dma.vmem_to_hbm [thread:$0]  %s1459, 128, %s7, [#allocation3]
    $region33: #{lstm_model_forward.1} parent=1 // pred_fallthru
      _
    // Predicated region
    $region34: #{lstm_model_forward.1} parent=1 // pred_check
      _
    $region35: #{lstm_model_forward.1} parent=1 // pred_check_branch
      %1463 = sbr.rel (0) target = $region37
    $region36: #{lstm_model_forward.1} parent=1 // pred_region
      %1464 = dma.done [#allocation3], 128
    $region37: #{lstm_model_forward.1} parent=1 // pred_fallthru
      _
    %1465 = vsyncpa [#allocation3], 1

</llo_original>
